<compile_context>
chip_gen: v7x
topology: tpu7x:2x2x1
jax: 0.10.0
libtpu: 0.0.40
codegen_flags: <defaults>
</compile_context>

<pallas_src>
import functools

import jax
import jax.numpy as jnp
from jax.experimental import pallas as pl
from jax.experimental.pallas import tpu as pltpu

_BN_EPS = 1e-5
_LANE = 128
_VMEM_LIMIT = 32 * 1024 * 1024    # scoped VMEM limit: safe on v5e/v6e (128 MiB) and v7x (64 MiB)
_TILE_BUDGET = 20 * 1024 * 1024   # per-grid-step working-set budget (headroom for v7x)
_FUSED_LIMIT = 6 * 1024 * 1024    # "whole network resident in VMEM" fast-path threshold


def _round_up(v, m):
    return (v + m - 1) // m * m


def _const_spec(shape):
    # Grid-invariant operand: constant block index -> stays VMEM-resident across tiles.
    return pl.BlockSpec(shape, lambda *_: (0,) * len(shape))


def _folded_bn_relu(x, mean, msq, gamma, beta, eps):
    """ReLU(BatchNorm(x)) folded from full-batch moments E[z], E[z^2] (all f32)."""
    var = jnp.maximum(msq - mean * mean, 0.0)          # clamp f32 cancellation -> no NaN
    scale = gamma * jax.lax.rsqrt(var + eps)           # rsqrt runs on the EUP slot
    shift = beta - mean * scale
    return jnp.maximum(x * scale + shift, 0.0)


# --------------------------------------------------------------------------------------
# Kernels
# --------------------------------------------------------------------------------------
def _make_fused_kernel(num_bn, eps):
    """Whole network in one invocation: the full batch stays resident in VMEM."""

    def kernel(*refs):
        x_ref = refs[0]
        out_ref = refs[-1]
        h = x_ref[...].astype(jnp.float32)
        pos = 1
        for _ in range(num_bn):
            w_ref, g_ref, be_ref = refs[pos], refs[pos + 1], refs[pos + 2]
            pos += 3
            z = jnp.dot(h.astype(jnp.bfloat16), w_ref[...],
                        preferred_element_type=jnp.float32)
            mean = jnp.mean(z, axis=0, keepdims=True)
            msq = jnp.mean(z * z, axis=0, keepdims=True)
            h = _folded_bn_relu(z, mean, msq, g_ref[...], be_ref[...], eps)
        w_ref, b_ref = refs[pos], refs[pos + 1]
        out_ref[...] = (jnp.dot(h.astype(jnp.bfloat16), w_ref[...],
                                preferred_element_type=jnp.float32)
                        + b_ref[...]).astype(out_ref.dtype)

    return kernel


def _make_hidden_kernel(has_bn, tb, true_batch, eps):
    """Streaming hidden layer: apply the previous layer's folded BN + ReLU (if any),
    z = h @ W on the MXU (bf16 operands, f32 accumulate), store z as bf16, and write this
    tile's partial sum / sum-of-squares into its own (1,1,out) block (no revisits)."""

    def kernel(*refs):
        if has_bn:
            x_ref, mean_ref, msq_ref, g_ref, be_ref, w_ref, z_ref, ps_ref, pq_ref = refs
        else:
            x_ref, w_ref, z_ref, ps_ref, pq_ref = refs

        h = x_ref[...].astype(jnp.float32)
        if has_bn:
            h = _folded_bn_relu(h, mean_ref[...], msq_ref[...],
                                g_ref[...], be_ref[...], eps)

        z = jnp.dot(h.astype(jnp.bfloat16), w_ref[...], preferred_element_type=jnp.float32)
        z_ref[...] = z.astype(z_ref.dtype)      # bf16 intermediate -> half the HBM traffic

        if true_batch is not None:              # batch was padded: mask pad rows out of stats
            rows = pl.program_id(0) * tb + jax.lax.broadcasted_iota(jnp.int32, (tb, 1), 0)
            z = jnp.where(rows < true_batch, z, 0.0)

        ps_ref[...] = jnp.sum(z, axis=0, keepdims=True)[None]       # (1, 1, out_p)
        pq_ref[...] = jnp.sum(z * z, axis=0, keepdims=True)[None]

    return kernel


def _make_final_kernel(has_bn, eps):
    """Streaming final layer: previous folded BN + ReLU, then Linear with bias."""

    def kernel(*refs):
        if has_bn:
            x_ref, mean_ref, msq_ref, g_ref, be_ref, w_ref, b_ref, o_ref = refs
        else:
            x_ref, w_ref, b_ref, o_ref = refs
        h = x_ref[...].astype(jnp.float32)
        if has_bn:
            h = _folded_bn_relu(h, mean_ref[...], msq_ref[...],
                                g_ref[...], be_ref[...], eps)
        o_ref[...] = (jnp.dot(h.astype(jnp.bfloat16), w_ref[...],
                              preferred_element_type=jnp.float32)
                      + b_ref[...]).astype(o_ref.dtype)

    return kernel


# --------------------------------------------------------------------------------------
# pallas_call wrappers
# --------------------------------------------------------------------------------------
def _forward_fused(x, bn_layers, final_w, final_b, output_size, eps):
    batch, in_f = x.shape
    out_p = final_w.shape[1]
    operands = [x.astype(jnp.float32)]
    in_specs = [_const_spec((batch, in_f))]
    for (w, g, b) in bn_layers:
        operands += [w, g, b]
        in_specs += [_const_spec(w.shape), _const_spec(g.shape), _const_spec(b.shape)]
    operands += [final_w, final_b]
    in_specs += [_const_spec(final_w.shape), _const_spec(final_b.shape)]

    out = pl.pallas_call(
        _make_fused_kernel(len(bn_layers), eps),
        grid=(1,),
        in_specs=in_specs,
        out_specs=_const_spec((batch, out_p)),
        out_shape=jax.ShapeDtypeStruct((batch, out_p), jnp.float32),
        compiler_params=pltpu.CompilerParams(
            dimension_semantics=("arbitrary",),
            vmem_limit_bytes=_VMEM_LIMIT),
    )(*operands)
    return out[:, :output_size]


def _hidden_layer_call(h, bn_fold, w_bf16, tb, n_tiles, true_batch, eps):
    pb, in_f = h.shape
    out_p = w_bf16.shape[1]
    has_bn = bn_fold is not None

    operands = [h]
    in_specs = [pl.BlockSpec((tb, in_f), lambda i: (i, 0))]
    if has_bn:
        operands += list(bn_fold)                             # mean, msq, gamma, beta
        in_specs += [_const_spec((1, in_f))] * 4
    operands += [w_bf16]
    in_specs += [_const_spec((in_f, out_p))]

    out_shape = (
        jax.ShapeDtypeStruct((pb, out_p), jnp.bfloat16),        # z (bf16 intermediate)
        jax.ShapeDtypeStruct((n_tiles, 1, out_p), jnp.float32),  # per-tile sum(z)
        jax.ShapeDtypeStruct((n_tiles, 1, out_p), jnp.float32),  # per-tile sum(z*z)
    )
    out_specs = (
        pl.BlockSpec((tb, out_p), lambda i: (i, 0)),
        pl.BlockSpec((1, 1, out_p), lambda i: (i, 0, 0)),
        pl.BlockSpec((1, 1, out_p), lambda i: (i, 0, 0)),
    )
    return pl.pallas_call(
        _make_hidden_kernel(has_bn, tb, true_batch, eps),
        grid=(n_tiles,),
        in_specs=in_specs,
        out_specs=out_specs,
        out_shape=out_shape,
        compiler_params=pltpu.CompilerParams(
            dimension_semantics=("parallel",),   # no revisited outputs -> megacore-shardable
            vmem_limit_bytes=_VMEM_LIMIT),
    )(*operands)


def _final_layer_call(h, bn_fold, w_bf16, b, tb, eps):
    pb, in_f = h.shape
    out_p = w_bf16.shape[1]
    has_bn = bn_fold is not None

    operands = [h]
    in_specs = [pl.BlockSpec((tb, in_f), lambda i: (i, 0))]
    if has_bn:
        operands += list(bn_fold)
        in_specs += [_const_spec((1, in_f))] * 4
    operands += [w_bf16, b]
    in_specs += [_const_spec((in_f, out_p)), _const_spec((1, out_p))]

    return pl.pallas_call(
        _make_final_kernel(has_bn, eps),
        grid=(pb // tb,),
        in_specs=in_specs,
        out_specs=pl.BlockSpec((tb, out_p), lambda i: (i, 0)),
        out_shape=jax.ShapeDtypeStruct((pb, out_p), jnp.float32),
        compiler_params=pltpu.CompilerParams(
            dimension_semantics=("parallel",),
            vmem_limit_bytes=_VMEM_LIMIT),
    )(*operands)


def _pick_block_rows(batch, bytes_per_row):
    cap = 8192
    while cap > 128 and cap * bytes_per_row > _TILE_BUDGET:
        cap //= 2
    if batch <= cap:
        return max(8, _round_up(batch, 8))        # single tile (rounded to sublane multiple)
    for tb in (8192, 4096, 2048, 1024, 512, 256, 128):
        if tb <= cap and batch % tb == 0:
            return tb
    return cap  # no exact divisor: the caller pads the batch and masks the statistics


def _forward_streaming(x, bn_layers, final_w, final_b, output_size, eps, block_rows=None):
    batch, in_f = x.shape
    max_w = max([in_f] + [w.shape[1] for (w, _, _) in bn_layers] + [final_w.shape[1]])
    tb = block_rows if block_rows is not None else _pick_block_rows(batch, 12 * max_w)
    n_tiles = pl.cdiv(batch, tb)
    padded_batch = n_tiles * tb
    true_batch = batch if padded_batch != batch else None

    h = x.astype(jnp.float32)
    if padded_batch != batch:
        h = jnp.pad(h, ((0, padded_batch - batch), (0, 0)))

    bn_fold = None                  # (mean, mean_of_squares, gamma, beta) of the previous layer
    for (w, gamma, beta) in bn_layers:
        z, psum, psq = _hidden_layer_call(h, bn_fold, w, tb, n_tiles, true_batch, eps)
        mean = jnp.sum(psum, axis=0) / batch        # (1, out_p) full-batch first moment
        msq = jnp.sum(psq, axis=0) / batch          # (1, out_p) full-batch second moment
        bn_fold = (mean, msq, gamma, beta)
        h = z                                       # bf16 intermediate activations

    out = _final_layer_call(h, bn_fold, final_w, final_b, tb, eps)
    return out[:batch, :output_size]


def neuron_network_forward(x, prep, *, output_size, force_streaming=False,
                           block_rows=None, eps=_BN_EPS):
    """Forward pass matching the PyTorch module (BatchNorm1d in training mode)."""
    bn_layers = prep["bn"]
    final_w, final_b = prep["final"]
    batch, in_f = x.shape
    max_w = max([in_f] + [w.shape[1] for (w, _, _) in bn_layers] + [final_w.shape[1]])
    fused_bytes = (4 * batch * (in_f + 2 * max_w)
                   + sum(w.size * 2 for (w, _, _) in bn_layers) + final_w.size * 2)
    if not force_streaming and fused_bytes <= _FUSED_LIMIT:
        return _forward_fused(x, bn_layers, final_w, final_b, output_size, eps)
    return _forward_streaming(x, bn_layers, final_w, final_b, output_size, eps, block_rows)


# --------------------------------------------------------------------------------------
# Parameter handling (one-time, outside the hot path)
# --------------------------------------------------------------------------------------
def prepare_params(params, num_bn_layers):
    """Pad hidden/output features to 128 lanes, cast weights to bf16, drop hidden biases
    (a bias before training-mode BatchNorm is a mathematical no-op)."""
    bn = []
    idx = 0
    prev_pad = 0  # zero rows appended to match the previous layer's padded width
    for _ in range(num_bn_layers):
        w, _b, gamma, beta = params[idx:idx + 4]
        idx += 4
        out_f = w.shape[1]
        out_p = _round_up(out_f, _LANE)
        w_p = jnp.pad(w, ((0, prev_pad), (0, out_p - out_f))).astype(jnp.bfloat16)
        g_p = jnp.pad(gamma, ((0, 0), (0, out_p - out_f)), constant_values=1.0)
        be_p = jnp.pad(beta, ((0, 0), (0, out_p - out_f)))
        bn.append((w_p, g_p, be_p))
        prev_pad = out_p - out_f
    w, b = params[idx], params[idx + 1]
    out_f = w.shape[1]
    out_p = _round_up(out_f, _LANE)
    w_p = jnp.pad(w, ((0, prev_pad), (0, out_p - out_f))).astype(jnp.bfloat16)
    b_p = jnp.pad(b, ((0, 0), (0, out_p - out_f)))
    return {"bn": bn, "final": (w_p, b_p)}


def init_params(key, input_size, output_size, hidden_sizes):
    """Deterministic init matching the PyTorch module.

    Linear: kaiming_uniform_(nonlinearity='relu') => U(-sqrt(6/fan_in), sqrt(6/fan_in)),
            bias filled with 0.01. BatchNorm1d: gamma=1, beta=0.
    Weights are stored transposed as (in, out) for x @ W_t. All params are f32.
    Returns flat list: [W1_t, b1, g1, beta1, ..., Wlast_t, blast].
    """
    layer = len(hidden_sizes)
    params = []
    for i in range(layer):
        if i == 0:
            in_f, out_f, has_bn = input_size, hidden_sizes[i], True
        elif i == layer - 1:
            in_f, out_f, has_bn = hidden_sizes[i - 1], output_size, False
        else:
            in_f, out_f, has_bn = hidden_sizes[i - 1], hidden_sizes[i], True
        key, sub = jax.random.split(key)
        bound = jnp.sqrt(6.0 / in_f)
        w_t = jax.random.uniform(sub, (in_f, out_f), dtype=jnp.float32,
                                 minval=-bound, maxval=bound)
        b = jnp.full((1, out_f), 0.01, dtype=jnp.float32)
        params.extend([w_t, b])
        if has_bn:
            params.append(jnp.ones((1, out_f), dtype=jnp.float32))   # gamma
            params.append(jnp.zeros((1, out_f), dtype=jnp.float32))  # beta
    return params


def reference_forward(x, params, num_bn_layers):
    """Pure-JAX f32 reference (exact PyTorch forward semantics, biases included)."""
    h = x
    idx = 0
    for _ in range(num_bn_layers):
        w_t, b, g, beta = params[idx:idx + 4]
        idx += 4
        h = h @ w_t + b
        mean = jnp.mean(h, axis=0, keepdims=True)
        var = jnp.mean((h - mean) ** 2, axis=0, keepdims=True)
        h = g * (h - mean) / jnp.sqrt(var + _BN_EPS) + beta
        h = jnp.maximum(h, 0.0)
    w_t, b = params[idx], params[idx + 1]
    return h @ w_t + b


if __name__ == "__main__":
    input_size = 16
    hidden_sizes = [32, 32, 32]   # Linear(16,32)+BN+ReLU, Linear(32,32)+BN+ReLU, Linear(32,4)
    output_size = 4
    num_bn = len(hidden_sizes) - 1

    key = jax.random.PRNGKey(0)
    key, k_small, k_big = jax.random.split(key, 3)
    params = init_params(key, input_size, output_size, hidden_sizes)
    prep = prepare_params(params, num_bn)   # one-time bf16 cast + 128-lane padding

    # Path 1: small batch -> fully fused single pallas_call.
    x_small = jax.random.normal(k_small, (256, input_size), dtype=jnp.float32)
    fwd_fused = jax.jit(functools.partial(neuron_network_forward, output_size=output_size))
    out_small = jax.block_until_ready(fwd_fused(x_small, prep))
    ref_small = reference_forward(x_small, params, num_bn)
    assert out_small.shape == (256, output_size)
    err = float(jnp.max(jnp.abs(out_small - ref_small)))
    assert jnp.allclose(out_small, ref_small, atol=5e-2, rtol=5e-2), \
        f"fused path mismatch vs reference (max abs err {err})"

    # Path 2: batch-tiled streaming path (awkward batch -> padding + masked statistics,
    # bf16 intermediates, per-tile partial moments with a "parallel" batch axis).
    x_big = jax.random.normal(k_big, (1000, input_size), dtype=jnp.float32)
    fwd_stream = jax.jit(functools.partial(
        neuron_network_forward, output_size=output_size,
        force_streaming=True, block_rows=256))
    out_big = jax.block_until_ready(fwd_stream(x_big, prep))
    ref_big = reference_forward(x_big, params, num_bn)
    assert out_big.shape == (1000, output_size)
    err = float(jnp.max(jnp.abs(out_big - ref_big)))
    assert jnp.allclose(out_big, ref_big, atol=5e-2, rtol=5e-2), \
        f"streaming path mismatch vs reference (max abs err {err})"

    print("KERNEL_OK")
</pallas_src>

<mosaic_0001>
module attributes {stable_mosaic.version = 11 : i64} {
  func.func @kernel(%arg0: i32, %arg1: memref<256x16xf32, #tpu.memory_space<vmem>>, %arg2: memref<16x128xbf16, #tpu.memory_space<vmem>>, %arg3: memref<1x128xf32, #tpu.memory_space<vmem>>, %arg4: memref<1x128xf32, #tpu.memory_space<vmem>>, %arg5: memref<128x128xbf16, #tpu.memory_space<vmem>>, %arg6: memref<1x128xf32, #tpu.memory_space<vmem>>, %arg7: memref<1x128xf32, #tpu.memory_space<vmem>>, %arg8: memref<128x128xbf16, #tpu.memory_space<vmem>>, %arg9: memref<1x128xf32, #tpu.memory_space<vmem>>, %arg10: memref<256x128xf32, #tpu.memory_space<vmem>>) attributes {dimension_semantics = [#tpu.dimension_semantics<arbitrary>], iteration_bounds = array<i64: 1>, scalar_prefetch = 0 : i64, scratch_operands = 0 : i64, tpu.core_type = #tpu.core_type<tc>, window_params = [{pipeline_mode = #tpu.pipeline_mode<synchronous>, transform_indices = @transform_0, window_bounds = array<i64: 256, 16>}, {pipeline_mode = #tpu.pipeline_mode<synchronous>, transform_indices = @transform_1, window_bounds = array<i64: 16, 128>}, {pipeline_mode = #tpu.pipeline_mode<synchronous>, transform_indices = @transform_2, window_bounds = array<i64: 1, 128>}, {pipeline_mode = #tpu.pipeline_mode<synchronous>, transform_indices = @transform_3, window_bounds = array<i64: 1, 128>}, {pipeline_mode = #tpu.pipeline_mode<synchronous>, transform_indices = @transform_4, window_bounds = array<i64: 128, 128>}, {pipeline_mode = #tpu.pipeline_mode<synchronous>, transform_indices = @transform_5, window_bounds = array<i64: 1, 128>}, {pipeline_mode = #tpu.pipeline_mode<synchronous>, transform_indices = @transform_6, window_bounds = array<i64: 1, 128>}, {pipeline_mode = #tpu.pipeline_mode<synchronous>, transform_indices = @transform_7, window_bounds = array<i64: 128, 128>}, {pipeline_mode = #tpu.pipeline_mode<synchronous>, transform_indices = @transform_8, window_bounds = array<i64: 1, 128>}, {pipeline_mode = #tpu.pipeline_mode<synchronous>, transform_indices = @transform_9, window_bounds = array<i64: 256, 128>}]} {
    %c0 = arith.constant 0 : index
    %c0_0 = arith.constant 0 : index
    %0 = vector.load %arg1[%c0, %c0_0] : memref<256x16xf32, #tpu.memory_space<vmem>>, vector<256x16xf32>
    %1 = arith.truncf %0 : vector<256x16xf32> to vector<256x16xbf16>
    %c0_1 = arith.constant 0 : index
    %c0_2 = arith.constant 0 : index
    %2 = vector.load %arg2[%c0_1, %c0_2] : memref<16x128xbf16, #tpu.memory_space<vmem>>, vector<16x128xbf16>
    %cst = arith.constant dense<0.000000e+00> : vector<256x128xf32>
    %3 = tpu.matmul %1, %2, %cst {dimension_numbers = #tpu.dot_dimension_numbers<[1], [0], [0], [1], [0, 0, 1, 1], [], []>} : vector<256x16xbf16>, vector<16x128xbf16>, vector<256x128xf32> -> vector<256x128xf32>
    %cst_3 = arith.constant dense<0.000000e+00> : vector<128xf32>
    %4 = vector.multi_reduction <add>, %3, %cst_3 [0] : vector<256x128xf32> to vector<128xf32>
    %5 = vector.shape_cast %4 : vector<128xf32> to vector<1x128xf32>
    %cst_4 = arith.constant 2.560000e+02 : f32
    %6 = vector.broadcast %cst_4 : f32 to vector<1x128xf32>
    %7 = arith.divf %5, %6 : vector<1x128xf32>
    %8 = arith.mulf %3, %3 : vector<256x128xf32>
    %cst_5 = arith.constant dense<0.000000e+00> : vector<128xf32>
    %9 = vector.multi_reduction <add>, %8, %cst_5 [0] : vector<256x128xf32> to vector<128xf32>
    %10 = vector.shape_cast %9 : vector<128xf32> to vector<1x128xf32>
    %cst_6 = arith.constant 2.560000e+02 : f32
    %11 = vector.broadcast %cst_6 : f32 to vector<1x128xf32>
    %12 = arith.divf %10, %11 : vector<1x128xf32>
    %c0_7 = arith.constant 0 : index
    %c0_8 = arith.constant 0 : index
    %13 = vector.load %arg3[%c0_7, %c0_8] : memref<1x128xf32, #tpu.memory_space<vmem>>, vector<1x128xf32>
    %c0_9 = arith.constant 0 : index
    %c0_10 = arith.constant 0 : index
    %14 = vector.load %arg4[%c0_9, %c0_10] : memref<1x128xf32, #tpu.memory_space<vmem>>, vector<1x128xf32>
    %15 = arith.mulf %7, %7 : vector<1x128xf32>
    %16 = arith.subf %12, %15 : vector<1x128xf32>
    %cst_11 = arith.constant 0.000000e+00 : f32
    %17 = vector.broadcast %cst_11 : f32 to vector<1x128xf32>
    %18 = arith.maximumf %16, %17 : vector<1x128xf32>
    %cst_12 = arith.constant 9.99999974E-6 : f32
    %19 = vector.broadcast %cst_12 : f32 to vector<1x128xf32>
    %20 = arith.addf %18, %19 : vector<1x128xf32>
    %21 = math.rsqrt %20 : vector<1x128xf32>
    %22 = arith.mulf %13, %21 : vector<1x128xf32>
    %23 = arith.mulf %7, %22 : vector<1x128xf32>
    %24 = arith.subf %14, %23 : vector<1x128xf32>
    %25 = vector.broadcast %22 : vector<1x128xf32> to vector<256x128xf32>
    %26 = arith.mulf %3, %25 : vector<256x128xf32>
    %27 = vector.broadcast %24 : vector<1x128xf32> to vector<256x128xf32>
    %28 = arith.addf %26, %27 : vector<256x128xf32>
    %cst_13 = arith.constant 0.000000e+00 : f32
    %29 = vector.broadcast %cst_13 : f32 to vector<256x128xf32>
    %30 = arith.maximumf %28, %29 : vector<256x128xf32>
    %31 = arith.truncf %30 : vector<256x128xf32> to vector<256x128xbf16>
    %c0_14 = arith.constant 0 : index
    %c0_15 = arith.constant 0 : index
    %32 = vector.load %arg5[%c0_14, %c0_15] : memref<128x128xbf16, #tpu.memory_space<vmem>>, vector<128x128xbf16>
    %cst_16 = arith.constant dense<0.000000e+00> : vector<256x128xf32>
    %33 = tpu.matmul %31, %32, %cst_16 {dimension_numbers = #tpu.dot_dimension_numbers<[1], [0], [0], [1], [0, 0, 1, 1], [], []>} : vector<256x128xbf16>, vector<128x128xbf16>, vector<256x128xf32> -> vector<256x128xf32>
    %cst_17 = arith.constant dense<0.000000e+00> : vector<128xf32>
    %34 = vector.multi_reduction <add>, %33, %cst_17 [0] : vector<256x128xf32> to vector<128xf32>
    %35 = vector.shape_cast %34 : vector<128xf32> to vector<1x128xf32>
    %cst_18 = arith.constant 2.560000e+02 : f32
    %36 = vector.broadcast %cst_18 : f32 to vector<1x128xf32>
    %37 = arith.divf %35, %36 : vector<1x128xf32>
    %38 = arith.mulf %33, %33 : vector<256x128xf32>
    %cst_19 = arith.constant dense<0.000000e+00> : vector<128xf32>
    %39 = vector.multi_reduction <add>, %38, %cst_19 [0] : vector<256x128xf32> to vector<128xf32>
    %40 = vector.shape_cast %39 : vector<128xf32> to vector<1x128xf32>
    %cst_20 = arith.constant 2.560000e+02 : f32
    %41 = vector.broadcast %cst_20 : f32 to vector<1x128xf32>
    %42 = arith.divf %40, %41 : vector<1x128xf32>
    %c0_21 = arith.constant 0 : index
    %c0_22 = arith.constant 0 : index
    %43 = vector.load %arg6[%c0_21, %c0_22] : memref<1x128xf32, #tpu.memory_space<vmem>>, vector<1x128xf32>
    %c0_23 = arith.constant 0 : index
    %c0_24 = arith.constant 0 : index
    %44 = vector.load %arg7[%c0_23, %c0_24] : memref<1x128xf32, #tpu.memory_space<vmem>>, vector<1x128xf32>
    %45 = arith.mulf %37, %37 : vector<1x128xf32>
    %46 = arith.subf %42, %45 : vector<1x128xf32>
    %cst_25 = arith.constant 0.000000e+00 : f32
    %47 = vector.broadcast %cst_25 : f32 to vector<1x128xf32>
    %48 = arith.maximumf %46, %47 : vector<1x128xf32>
    %cst_26 = arith.constant 9.99999974E-6 : f32
    %49 = vector.broadcast %cst_26 : f32 to vector<1x128xf32>
    %50 = arith.addf %48, %49 : vector<1x128xf32>
    %51 = math.rsqrt %50 : vector<1x128xf32>
    %52 = arith.mulf %43, %51 : vector<1x128xf32>
    %53 = arith.mulf %37, %52 : vector<1x128xf32>
    %54 = arith.subf %44, %53 : vector<1x128xf32>
    %55 = vector.broadcast %52 : vector<1x128xf32> to vector<256x128xf32>
    %56 = arith.mulf %33, %55 : vector<256x128xf32>
    %57 = vector.broadcast %54 : vector<1x128xf32> to vector<256x128xf32>
    %58 = arith.addf %56, %57 : vector<256x128xf32>
    %cst_27 = arith.constant 0.000000e+00 : f32
    %59 = vector.broadcast %cst_27 : f32 to vector<256x128xf32>
    %60 = arith.maximumf %58, %59 : vector<256x128xf32>
    %61 = arith.truncf %60 : vector<256x128xf32> to vector<256x128xbf16>
    %c0_28 = arith.constant 0 : index
    %c0_29 = arith.constant 0 : index
    %62 = vector.load %arg8[%c0_28, %c0_29] : memref<128x128xbf16, #tpu.memory_space<vmem>>, vector<128x128xbf16>
    %cst_30 = arith.constant dense<0.000000e+00> : vector<256x128xf32>
    %63 = tpu.matmul %61, %62, %cst_30 {dimension_numbers = #tpu.dot_dimension_numbers<[1], [0], [0], [1], [0, 0, 1, 1], [], []>} : vector<256x128xbf16>, vector<128x128xbf16>, vector<256x128xf32> -> vector<256x128xf32>
    %c0_31 = arith.constant 0 : index
    %c0_32 = arith.constant 0 : index
    %64 = vector.load %arg9[%c0_31, %c0_32] : memref<1x128xf32, #tpu.memory_space<vmem>>, vector<1x128xf32>
    %65 = vector.broadcast %64 : vector<1x128xf32> to vector<256x128xf32>
    %66 = arith.addf %63, %65 : vector<256x128xf32>
    %c0_33 = arith.constant 0 : index
    %c0_34 = arith.constant 0 : index
    %67 = vector.load %arg10[%c0_33, %c0_34] : memref<256x128xf32, #tpu.memory_space<vmem>>, vector<256x128xf32>
    tpu.vector_store %arg10[%c0_33, %c0_34], %66 {strides = array<i32>} : memref<256x128xf32, #tpu.memory_space<vmem>>, vector<256x128xf32>,
    return
  }
  func.func @transform_0(%arg0: i32) -> (i32, i32) {
    %c0_i32 = arith.constant 0 : i32
    %c0_i32_0 = arith.constant 0 : i32
    %c0_i32_1 = arith.constant 0 : i32
    return %c0_i32, %c0_i32_0 : i32, i32
  }
  func.func @transform_1(%arg0: i32) -> (i32, i32) {
    %c0_i32 = arith.constant 0 : i32
    %c0_i32_0 = arith.constant 0 : i32
    %c0_i32_1 = arith.constant 0 : i32
    return %c0_i32, %c0_i32_0 : i32, i32
  }
  func.func @transform_2(%arg0: i32) -> (i32, i32) {
    %c0_i32 = arith.constant 0 : i32
    %c0_i32_0 = arith.constant 0 : i32
    %c0_i32_1 = arith.constant 0 : i32
    return %c0_i32, %c0_i32_0 : i32, i32
  }
  func.func @transform_3(%arg0: i32) -> (i32, i32) {
    %c0_i32 = arith.constant 0 : i32
    %c0_i32_0 = arith.constant 0 : i32
    %c0_i32_1 = arith.constant 0 : i32
    return %c0_i32, %c0_i32_0 : i32, i32
  }
  func.func @transform_4(%arg0: i32) -> (i32, i32) {
    %c0_i32 = arith.constant 0 : i32
    %c0_i32_0 = arith.constant 0 : i32
    %c0_i32_1 = arith.constant 0 : i32
    return %c0_i32, %c0_i32_0 : i32, i32
  }
  func.func @transform_5(%arg0: i32) -> (i32, i32) {
    %c0_i32 = arith.constant 0 : i32
    %c0_i32_0 = arith.constant 0 : i32
    %c0_i32_1 = arith.constant 0 : i32
    return %c0_i32, %c0_i32_0 : i32, i32
  }
  func.func @transform_6(%arg0: i32) -> (i32, i32) {
    %c0_i32 = arith.constant 0 : i32
    %c0_i32_0 = arith.constant 0 : i32
    %c0_i32_1 = arith.constant 0 : i32
    return %c0_i32, %c0_i32_0 : i32, i32
  }
  func.func @transform_7(%arg0: i32) -> (i32, i32) {
    %c0_i32 = arith.constant 0 : i32
    %c0_i32_0 = arith.constant 0 : i32
    %c0_i32_1 = arith.constant 0 : i32
    return %c0_i32, %c0_i32_0 : i32, i32
  }
  func.func @transform_8(%arg0: i32) -> (i32, i32) {
    %c0_i32 = arith.constant 0 : i32
    %c0_i32_0 = arith.constant 0 : i32
    %c0_i32_1 = arith.constant 0 : i32
    return %c0_i32, %c0_i32_0 : i32, i32
  }
  func.func @transform_9(%arg0: i32) -> (i32, i32) {
    %c0_i32 = arith.constant 0 : i32
    %c0_i32_0 = arith.constant 0 : i32
    %c0_i32_1 = arith.constant 0 : i32
    return %c0_i32, %c0_i32_0 : i32, i32
  }
}

</mosaic_0001>

<llo_original>
// kernel: neuron_network_forward.1
$region0: #{neuron_network_forward.1}
  #allocation0 [shape = 'u32[]', space=smem, size = 0x4, offset = 0x4, fixed_abs, tag = 'smem constant byte address 0x4 - core index']
  #allocation1 [shape = 'u32[144,128]{1,0:T(1,128)}', space=vmem, size = 0x12000, scoped, tag = 'internal scratch']
  %s0 = inlined_call_operand.vmem [shape: f32[256,16], index: 0, kind: input, shape index: {}]
  %s1 = inlined_call_operand.vmem [shape: bf16[16,128], index: 1, kind: input, shape index: {}]
  %s2 = inlined_call_operand.vmem [shape: f32[1,128], index: 2, kind: input, shape index: {}]
  %s3 = inlined_call_operand.vmem [shape: f32[1,128], index: 3, kind: input, shape index: {}]
  %s4 = inlined_call_operand.vmem [shape: bf16[128,128], index: 4, kind: input, shape index: {}]
  %s5 = inlined_call_operand.vmem [shape: f32[1,128], index: 5, kind: input, shape index: {}]
  %s6 = inlined_call_operand.vmem [shape: f32[1,128], index: 6, kind: input, shape index: {}]
  %s7 = inlined_call_operand.vmem [shape: bf16[128,128], index: 7, kind: input, shape index: {}]
  %s8 = inlined_call_operand.vmem [shape: f32[1,128], index: 8, kind: input, shape index: {}]
  %s9 = inlined_call_operand.vmem [shape: f32[256,128], index: 9, kind: output, shape index: {}]
  %s10 = sld [smem:[#allocation0]]
  $region46: #{neuron_network_forward.1} parent=0
    _
  %s12 = ssub.s32 1, %s10
  %s13 = scalar_select 0, %s12, %s10
  // Predicated region
  $region2: #{neuron_network_forward.1} parent=0 // pred_check
    _
  $region3: #{neuron_network_forward.1} parent=0 // pred_check_branch
    %15 = sbr.rel (0) target = $region5
  $region4: #{neuron_network_forward.1} parent=0 // pred_region
    _
  $region5: #{neuron_network_forward.1} parent=0 // pred_fallthru
    _
  // Predicated region
  $region6: #{neuron_network_forward.1} parent=0 // pred_check
    _
  $region7: #{neuron_network_forward.1} parent=0 // pred_check_branch
    %17 = sbr.rel (0) target = $region9
  $region8: #{neuron_network_forward.1} parent=0 // pred_region
    _
  $region9: #{neuron_network_forward.1} parent=0 // pred_fallthru
    _
  // Predicated region
  $region10: #{neuron_network_forward.1} parent=0 // pred_check
    _
  $region11: #{neuron_network_forward.1} parent=0 // pred_check_branch
    %19 = sbr.rel (0) target = $region13
  $region12: #{neuron_network_forward.1} parent=0 // pred_region
    _
  $region13: #{neuron_network_forward.1} parent=0 // pred_fallthru
    _
  // Predicated region
  $region14: #{neuron_network_forward.1} parent=0 // pred_check
    _
  $region15: #{neuron_network_forward.1} parent=0 // pred_check_branch
    %21 = sbr.rel (0) target = $region17
  $region16: #{neuron_network_forward.1} parent=0 // pred_region
    _
  $region17: #{neuron_network_forward.1} parent=0 // pred_fallthru
    _
  // Predicated region
  $region18: #{neuron_network_forward.1} parent=0 // pred_check
    _
  $region19: #{neuron_network_forward.1} parent=0 // pred_check_branch
    %23 = sbr.rel (0) target = $region21
  $region20: #{neuron_network_forward.1} parent=0 // pred_region
    _
  $region21: #{neuron_network_forward.1} parent=0 // pred_fallthru
    _
  // Predicated region
  $region22: #{neuron_network_forward.1} parent=0 // pred_check
    _
  $region23: #{neuron_network_forward.1} parent=0 // pred_check_branch
    %25 = sbr.rel (0) target = $region25
  $region24: #{neuron_network_forward.1} parent=0 // pred_region
    _
  $region25: #{neuron_network_forward.1} parent=0 // pred_fallthru
    _
  // Predicated region
  $region26: #{neuron_network_forward.1} parent=0 // pred_check
    _
  $region27: #{neuron_network_forward.1} parent=0 // pred_check_branch
    %27 = sbr.rel (0) target = $region29
  $region28: #{neuron_network_forward.1} parent=0 // pred_region
    _
  $region29: #{neuron_network_forward.1} parent=0 // pred_fallthru
    _
  // Predicated region
  $region30: #{neuron_network_forward.1} parent=0 // pred_check
    _
  $region31: #{neuron_network_forward.1} parent=0 // pred_check_branch
    %29 = sbr.rel (0) target = $region33
  $region32: #{neuron_network_forward.1} parent=0 // pred_region
    _
  $region33: #{neuron_network_forward.1} parent=0 // pred_fallthru
    _
  // Predicated region
  $region34: #{neuron_network_forward.1} parent=0 // pred_check
    _
  $region35: #{neuron_network_forward.1} parent=0 // pred_check_branch
    %31 = sbr.rel (0) target = $region37
  $region36: #{neuron_network_forward.1} parent=0 // pred_region
    _
  $region37: #{neuron_network_forward.1} parent=0 // pred_fallthru
    _
  %v33 = vld [vmem:[%s0] sm:$0xff]
  %v34 = vld [vmem:[%s0 + $0x8] sm:$0xff]
  %v35 = vld [vmem:[%s0 + $0x10] sm:$0xff]
  %v36 = vld [vmem:[%s0 + $0x18] sm:$0xff]
  %v37 = vld [vmem:[%s0 + $0x20] sm:$0xff]
  %v38 = vld [vmem:[%s0 + $0x28] sm:$0xff]
  %v39 = vld [vmem:[%s0 + $0x30] sm:$0xff]
  %v40 = vld [vmem:[%s0 + $0x38] sm:$0xff]
  %v41 = vld [vmem:[%s0 + $0x40] sm:$0xff]
  %v42 = vld [vmem:[%s0 + $0x48] sm:$0xff]
  %v43 = vld [vmem:[%s0 + $0x50] sm:$0xff]
  %v44 = vld [vmem:[%s0 + $0x58] sm:$0xff]
  %v45 = vld [vmem:[%s0 + $0x60] sm:$0xff]
  %v46 = vld [vmem:[%s0 + $0x68] sm:$0xff]
  %v47 = vld [vmem:[%s0 + $0x70] sm:$0xff]
  %v48 = vld [vmem:[%s0 + $0x78] sm:$0xff]
  %v49 = vld [vmem:[%s0 + $0x80] sm:$0xff]
  %v50 = vld [vmem:[%s0 + $0x88] sm:$0xff]
  %v51 = vld [vmem:[%s0 + $0x90] sm:$0xff]
  %v52 = vld [vmem:[%s0 + $0x98] sm:$0xff]
  %v53 = vld [vmem:[%s0 + $0xa0] sm:$0xff]
  %v54 = vld [vmem:[%s0 + $0xa8] sm:$0xff]
  %v55 = vld [vmem:[%s0 + $0xb0] sm:$0xff]
  %v56 = vld [vmem:[%s0 + $0xb8] sm:$0xff]
  %v57 = vld [vmem:[%s0 + $0xc0] sm:$0xff]
  %v58 = vld [vmem:[%s0 + $0xc8] sm:$0xff]
  %v59 = vld [vmem:[%s0 + $0xd0] sm:$0xff]
  %v60 = vld [vmem:[%s0 + $0xd8] sm:$0xff]
  %v61 = vld [vmem:[%s0 + $0xe0] sm:$0xff]
  %v62 = vld [vmem:[%s0 + $0xe8] sm:$0xff]
  %v63 = vld [vmem:[%s0 + $0xf0] sm:$0xff]
  %v64 = vld [vmem:[%s0 + $0xf8] sm:$0xff]
  %v65 = vpack.c.bf16 %v34, %v33
  %v66 = vpack.c.bf16 %v36, %v35
  %v67 = vpack.c.bf16 %v38, %v37
  %v68 = vpack.c.bf16 %v40, %v39
  %v69 = vpack.c.bf16 %v42, %v41
  %v70 = vpack.c.bf16 %v44, %v43
  %v71 = vpack.c.bf16 %v46, %v45
  %v72 = vpack.c.bf16 %v48, %v47
  %v73 = vpack.c.bf16 %v50, %v49
  %v74 = vpack.c.bf16 %v52, %v51
  %v75 = vpack.c.bf16 %v54, %v53
  %v76 = vpack.c.bf16 %v56, %v55
  %v77 = vpack.c.bf16 %v58, %v57
  %v78 = vpack.c.bf16 %v60, %v59
  %v79 = vpack.c.bf16 %v62, %v61
  %v80 = vpack.c.bf16 %v64, %v63
  %v81 = vld [vmem:[%s1] sm:$0xf]
  %v82 = vld [vmem:[%s1 + $0x4] sm:$0xf]
  %v85 = vunpack.c.l.b16 %v81
  %v86 = vunpack.c.l.b16 %v82
  %v87 = vpack.c.b16 %v86, %v85
  %vm89 = vcmask 130048
  %v91 = vsel %vm89, %v65, 0
  %v94 = vsel %vm89, %v66, 0
  %v97 = vsel %vm89, %v67, 0
  %v100 = vsel %vm89, %v68, 0
  %v103 = vsel %vm89, %v69, 0
  %v106 = vsel %vm89, %v70, 0
  %v109 = vsel %vm89, %v71, 0
  %v112 = vsel %vm89, %v72, 0
  %v115 = vsel %vm89, %v73, 0
  %v118 = vsel %vm89, %v74, 0
  %v121 = vsel %vm89, %v75, 0
  %v124 = vsel %vm89, %v76, 0
  %v127 = vsel %vm89, %v77, 0
  %v130 = vsel %vm89, %v78, 0
  %v133 = vsel %vm89, %v79, 0
  %v136 = vsel %vm89, %v80, 0
  %138 = vmatprep.subr.bf16.mxu0 0
  %139 = vmatpush1.bf16.msra.mxu0 %v87
  %140 = vmatprep.subr.bf16.mxu0 0
  %141 = vmatpush1.bf16.msra.mxu0 0
  %142 = vmatprep.subr.bf16.mxu0 0
  %143 = vmatpush1.bf16.msra.mxu0 0
  %144 = vmatprep.subr.bf16.mxu0 0
  %145 = vmatpush1.bf16.msra.mxu0 0
  %146 = vmatprep.subr.bf16.mxu0 0
  %147 = vmatpush1.bf16.msra.mxu0 0
  %148 = vmatprep.subr.bf16.mxu0 0
  %149 = vmatpush1.bf16.msra.mxu0 0
  %150 = vmatprep.subr.bf16.mxu0 0
  %151 = vmatpush1.bf16.msra.mxu0 0
  %152 = vmatprep.subr.bf16.mxu0 0
  %153 = vmatpush1.bf16.msra.mxu0 0
  %154 = vmatprep.subr.bf16.mxu0 0
  %155 = vmatpush1.bf16.msra.mxu0 0
  %156 = vmatprep.subr.bf16.mxu0 0
  %157 = vmatpush1.bf16.msra.mxu0 0
  %158 = vmatprep.subr.bf16.mxu0 0
  %159 = vmatpush1.bf16.msra.mxu0 0
  %160 = vmatprep.subr.bf16.mxu0 0
  %161 = vmatpush1.bf16.msra.mxu0 0
  %162 = vmatprep.subr.bf16.mxu0 0
  %163 = vmatpush1.bf16.msra.mxu0 0
  %164 = vmatprep.subr.bf16.mxu0 0
  %165 = vmatpush1.bf16.msra.mxu0 0
  %166 = vmatprep.subr.bf16.mxu0 0
  %167 = vmatpush1.bf16.msra.mxu0 0
  %168 = vmatprep.subr.bf16.mxu0 0
  %169 = vmatpush1.bf16.msra.mxu0 0
  %170 = vmatprep.mubr.bf16.mxu0 0
  %171 = vmatmul.mubr.bf16.gmra.mrb[0].mxu0 %v91
  %v172 = vpop.f32.mrb[0].mxu0
  %v173 = vadd.f32 0.0, %v172
  %v174 = vpop.f32.mrb[0].mxu0
  %v175 = vpop.f32.mrb[0].mxu0
  %v176 = vadd.f32 0.0, %v175
  %v177 = vpop.f32.mrb[0].mxu0
  %178 = vmatprep.mubr.bf16.mxu0 0
  %179 = vmatmul.mubr.bf16.gmra.mrb[0].mxu0 %v94
  %v180 = vpop.f32.mrb[0].mxu0
  %v181 = vadd.f32 0.0, %v180
  %v182 = vpop.f32.mrb[0].mxu0
  %v183 = vpop.f32.mrb[0].mxu0
  %v184 = vadd.f32 0.0, %v183
  %v185 = vpop.f32.mrb[0].mxu0
  %186 = vmatprep.mubr.bf16.mxu0 0
  %187 = vmatmul.mubr.bf16.gmra.mrb[0].mxu0 %v97
  %v188 = vpop.f32.mrb[0].mxu0
  %v189 = vadd.f32 0.0, %v188
  %v190 = vpop.f32.mrb[0].mxu0
  %v191 = vpop.f32.mrb[0].mxu0
  %v192 = vadd.f32 0.0, %v191
  %v193 = vpop.f32.mrb[0].mxu0
  %194 = vmatprep.mubr.bf16.mxu0 0
  %195 = vmatmul.mubr.bf16.gmra.mrb[0].mxu0 %v100
  %v196 = vpop.f32.mrb[0].mxu0
  %v197 = vadd.f32 0.0, %v196
  %v198 = vpop.f32.mrb[0].mxu0
  %v199 = vpop.f32.mrb[0].mxu0
  %v200 = vadd.f32 0.0, %v199
  %v201 = vpop.f32.mrb[0].mxu0
  %202 = vmatprep.mubr.bf16.mxu0 0
  %203 = vmatmul.mubr.bf16.gmra.mrb[0].mxu0 %v103
  %v204 = vpop.f32.mrb[0].mxu0
  %v205 = vadd.f32 0.0, %v204
  %v206 = vpop.f32.mrb[0].mxu0
  %v207 = vpop.f32.mrb[0].mxu0
  %v208 = vadd.f32 0.0, %v207
  %v209 = vpop.f32.mrb[0].mxu0
  %210 = vmatprep.mubr.bf16.mxu0 0
  %211 = vmatmul.mubr.bf16.gmra.mrb[0].mxu0 %v106
  %v212 = vpop.f32.mrb[0].mxu0
  %v213 = vadd.f32 0.0, %v212
  %v214 = vpop.f32.mrb[0].mxu0
  %v215 = vpop.f32.mrb[0].mxu0
  %v216 = vadd.f32 0.0, %v215
  %v217 = vpop.f32.mrb[0].mxu0
  %218 = vmatprep.mubr.bf16.mxu0 0
  %219 = vmatmul.mubr.bf16.gmra.mrb[0].mxu0 %v109
  %v220 = vpop.f32.mrb[0].mxu0
  %v221 = vadd.f32 0.0, %v220
  %v222 = vpop.f32.mrb[0].mxu0
  %v223 = vpop.f32.mrb[0].mxu0
  %v224 = vadd.f32 0.0, %v223
  %v225 = vpop.f32.mrb[0].mxu0
  %226 = vmatprep.mubr.bf16.mxu0 0
  %227 = vmatmul.mubr.bf16.gmra.mrb[0].mxu0 %v112
  %v228 = vpop.f32.mrb[0].mxu0
  %v229 = vadd.f32 0.0, %v228
  %v230 = vpop.f32.mrb[0].mxu0
  %v231 = vpop.f32.mrb[0].mxu0
  %v232 = vadd.f32 0.0, %v231
  %v233 = vpop.f32.mrb[0].mxu0
  %234 = vmatprep.mubr.bf16.mxu0 0
  %235 = vmatmul.mubr.bf16.gmra.mrb[0].mxu0 %v115
  %v236 = vpop.f32.mrb[0].mxu0
  %v237 = vadd.f32 0.0, %v236
  %v238 = vpop.f32.mrb[0].mxu0
  %v239 = vpop.f32.mrb[0].mxu0
  %v240 = vadd.f32 0.0, %v239
  %v241 = vpop.f32.mrb[0].mxu0
  %242 = vmatprep.mubr.bf16.mxu0 0
  %243 = vmatmul.mubr.bf16.gmra.mrb[0].mxu0 %v118
  %v244 = vpop.f32.mrb[0].mxu0
  %v245 = vadd.f32 0.0, %v244
  %v246 = vpop.f32.mrb[0].mxu0
  %v247 = vpop.f32.mrb[0].mxu0
  %v248 = vadd.f32 0.0, %v247
  %v249 = vpop.f32.mrb[0].mxu0
  %250 = vmatprep.mubr.bf16.mxu0 0
  %251 = vmatmul.mubr.bf16.gmra.mrb[0].mxu0 %v121
  %v252 = vpop.f32.mrb[0].mxu0
  %v253 = vadd.f32 0.0, %v252
  %v254 = vpop.f32.mrb[0].mxu0
  %v255 = vpop.f32.mrb[0].mxu0
  %v256 = vadd.f32 0.0, %v255
  %v257 = vpop.f32.mrb[0].mxu0
  %258 = vmatprep.mubr.bf16.mxu0 0
  %259 = vmatmul.mubr.bf16.gmra.mrb[0].mxu0 %v124
  %v260 = vpop.f32.mrb[0].mxu0
  %v261 = vadd.f32 0.0, %v260
  %v262 = vpop.f32.mrb[0].mxu0
  %v263 = vpop.f32.mrb[0].mxu0
  %v264 = vadd.f32 0.0, %v263
  %v265 = vpop.f32.mrb[0].mxu0
  %266 = vmatprep.mubr.bf16.mxu0 0
  %267 = vmatmul.mubr.bf16.gmra.mrb[0].mxu0 %v127
  %v268 = vpop.f32.mrb[0].mxu0
  %v269 = vadd.f32 0.0, %v268
  %v270 = vpop.f32.mrb[0].mxu0
  %v271 = vpop.f32.mrb[0].mxu0
  %v272 = vadd.f32 0.0, %v271
  %v273 = vpop.f32.mrb[0].mxu0
  %274 = vmatprep.mubr.bf16.mxu0 0
  %275 = vmatmul.mubr.bf16.gmra.mrb[0].mxu0 %v130
  %v276 = vpop.f32.mrb[0].mxu0
  %v277 = vadd.f32 0.0, %v276
  %v278 = vpop.f32.mrb[0].mxu0
  %v279 = vpop.f32.mrb[0].mxu0
  %v280 = vadd.f32 0.0, %v279
  %v281 = vpop.f32.mrb[0].mxu0
  %282 = vmatprep.mubr.bf16.mxu0 0
  %283 = vmatmul.mubr.bf16.gmra.mrb[0].mxu0 %v133
  %v284 = vpop.f32.mrb[0].mxu0
  %v285 = vadd.f32 0.0, %v284
  %v286 = vpop.f32.mrb[0].mxu0
  %v287 = vpop.f32.mrb[0].mxu0
  %v288 = vadd.f32 0.0, %v287
  %v289 = vpop.f32.mrb[0].mxu0
  %290 = vmatprep.mubr.bf16.mxu0 0
  %291 = vmatmul.mubr.bf16.gmra.mrb[0].mxu0 %v136
  %v292 = vpop.f32.mrb[0].mxu0
  %v293 = vadd.f32 0.0, %v292
  %v294 = vpop.f32.mrb[0].mxu0
  %v295 = vpop.f32.mrb[0].mxu0
  %v296 = vadd.f32 0.0, %v295
  %v297 = vpop.f32.mrb[0].mxu0
  %298 = vdwg.mxu0
  %v299 = vadd.f32 %v173, %v176
  %v300 = vadd.f32 %v299, %v181
  %v301 = vadd.f32 %v300, %v184
  %v302 = vadd.f32 %v301, %v189
  %v303 = vadd.f32 %v302, %v192
  %v304 = vadd.f32 %v303, %v197
  %v305 = vadd.f32 %v304, %v200
  %v306 = vadd.f32 %v305, %v205
  %v307 = vadd.f32 %v306, %v208
  %v308 = vadd.f32 %v307, %v213
  %v309 = vadd.f32 %v308, %v216
  %v310 = vadd.f32 %v309, %v221
  %v311 = vadd.f32 %v310, %v224
  %v312 = vadd.f32 %v311, %v229
  %v313 = vadd.f32 %v312, %v232
  %v314 = vadd.f32 %v313, %v237
  %v315 = vadd.f32 %v314, %v240
  %v316 = vadd.f32 %v315, %v245
  %v317 = vadd.f32 %v316, %v248
  %v318 = vadd.f32 %v317, %v253
  %v319 = vadd.f32 %v318, %v256
  %v320 = vadd.f32 %v319, %v261
  %v321 = vadd.f32 %v320, %v264
  %v322 = vadd.f32 %v321, %v269
  %v323 = vadd.f32 %v322, %v272
  %v324 = vadd.f32 %v323, %v277
  %v325 = vadd.f32 %v324, %v280
  %v326 = vadd.f32 %v325, %v285
  %v327 = vadd.f32 %v326, %v288
  %v328 = vadd.f32 %v327, %v293
  %v329 = vadd.f32 %v328, %v296
  %v330 = vrot.slane %v329, 4
  %v331 = vadd.f32 %v329, %v330
  %v332 = vrot.slane %v331, 2
  %v333 = vadd.f32 %v331, %v332
  %v334 = vrot.slane %v333, 1
  %v335 = vadd.f32 %v333, %v334
  %v336 = vrcp.pop 256.0
  %v337 = vmul.f32 %v335, %v336
  %v338 = vmul.f32 %v173, %v173
  %v339 = vmul.f32 %v176, %v176
  %v340 = vmul.f32 %v181, %v181
  %v341 = vmul.f32 %v184, %v184
  %v342 = vmul.f32 %v189, %v189
  %v343 = vmul.f32 %v192, %v192
  %v344 = vmul.f32 %v197, %v197
  %v345 = vmul.f32 %v200, %v200
  %v346 = vmul.f32 %v205, %v205
  %v347 = vmul.f32 %v208, %v208
  %v348 = vmul.f32 %v213, %v213
  %v349 = vmul.f32 %v216, %v216
  %v350 = vmul.f32 %v221, %v221
  %v351 = vmul.f32 %v224, %v224
  %v352 = vmul.f32 %v229, %v229
  %v353 = vmul.f32 %v232, %v232
  %v354 = vmul.f32 %v237, %v237
  %v355 = vmul.f32 %v240, %v240
  %v356 = vmul.f32 %v245, %v245
  %v357 = vmul.f32 %v248, %v248
  %v358 = vmul.f32 %v253, %v253
  %v359 = vmul.f32 %v256, %v256
  %v360 = vmul.f32 %v261, %v261
  %v361 = vmul.f32 %v264, %v264
  %v362 = vmul.f32 %v269, %v269
  %v363 = vmul.f32 %v272, %v272
  %v364 = vmul.f32 %v277, %v277
  %v365 = vmul.f32 %v280, %v280
  %v366 = vmul.f32 %v285, %v285
  %v367 = vmul.f32 %v288, %v288
  %v368 = vmul.f32 %v293, %v293
  %v369 = vmul.f32 %v296, %v296
  %v370 = vadd.f32 %v338, %v339
  %v371 = vadd.f32 %v370, %v340
  %v372 = vadd.f32 %v371, %v341
  %v373 = vadd.f32 %v372, %v342
  %v374 = vadd.f32 %v373, %v343
  %v375 = vadd.f32 %v374, %v344
  %v376 = vadd.f32 %v375, %v345
  %v377 = vadd.f32 %v376, %v346
  %v378 = vadd.f32 %v377, %v347
  %v379 = vadd.f32 %v378, %v348
  %v380 = vadd.f32 %v379, %v349
  %v381 = vadd.f32 %v380, %v350
  %v382 = vadd.f32 %v381, %v351
  %v383 = vadd.f32 %v382, %v352
  %v384 = vadd.f32 %v383, %v353
  %v385 = vadd.f32 %v384, %v354
  %v386 = vadd.f32 %v385, %v355
  %v387 = vadd.f32 %v386, %v356
  %v388 = vadd.f32 %v387, %v357
  %v389 = vadd.f32 %v388, %v358
  %v390 = vadd.f32 %v389, %v359
  %v391 = vadd.f32 %v390, %v360
  %v392 = vadd.f32 %v391, %v361
  %v393 = vadd.f32 %v392, %v362
  %v394 = vadd.f32 %v393, %v363
  %v395 = vadd.f32 %v394, %v364
  %v396 = vadd.f32 %v395, %v365
  %v397 = vadd.f32 %v396, %v366
  %v398 = vadd.f32 %v397, %v367
  %v399 = vadd.f32 %v398, %v368
  %v400 = vadd.f32 %v399, %v369
  %v401 = vrot.slane %v400, 4
  %v402 = vadd.f32 %v400, %v401
  %v403 = vrot.slane %v402, 2
  %v404 = vadd.f32 %v402, %v403
  %v405 = vrot.slane %v404, 1
  %v406 = vadd.f32 %v404, %v405
  %v407 = vmul.f32 %v406, %v336
  %v408 = vld [vmem:[%s2] sm:$0x1]
  %v409 = vld [vmem:[%s3] sm:$0x1]
  %v410 = vmul.f32 %v337, %v337
  %v411 = vsub.f32 %v407, %v410
  %v412 = vmax.f32 %v411, 0.0
  %v413 = vadd.f32 %v412, 1e-05
  %v414 = vrsqrt.pop %v413
  %v415 = vmul.f32 %v408, %v414
  %v416 = vmul.f32 %v337, %v415
  %v417 = vsub.f32 %v409, %v416
  %v419 = vlaneseq
  %v420 = vshrl.u32 %v419, 7
  %v421 = vsub.s32 0, %v420
  %v422 = vrot.slane %v415, %v421
  %v424 = vmul.f32 %v173, %v422
  %v425 = vmul.f32 %v176, %v422
  %v426 = vmul.f32 %v181, %v422
  %v427 = vmul.f32 %v184, %v422
  %v428 = vmul.f32 %v189, %v422
  %v429 = vmul.f32 %v192, %v422
  %v430 = vmul.f32 %v197, %v422
  %v431 = vmul.f32 %v200, %v422
  %v432 = vmul.f32 %v205, %v422
  %v433 = vmul.f32 %v208, %v422
  %v434 = vmul.f32 %v213, %v422
  %v435 = vmul.f32 %v216, %v422
  %v436 = vmul.f32 %v221, %v422
  %v437 = vmul.f32 %v224, %v422
  %v438 = vmul.f32 %v229, %v422
  %v439 = vmul.f32 %v232, %v422
  %v440 = vmul.f32 %v237, %v422
  %v441 = vmul.f32 %v240, %v422
  %v442 = vmul.f32 %v245, %v422
  %v443 = vmul.f32 %v248, %v422
  %v444 = vmul.f32 %v253, %v422
  %v445 = vmul.f32 %v256, %v422
  %v446 = vmul.f32 %v261, %v422
  %v447 = vmul.f32 %v264, %v422
  %v448 = vmul.f32 %v269, %v422
  %v449 = vmul.f32 %v272, %v422
  %v450 = vmul.f32 %v277, %v422
  %v451 = vmul.f32 %v280, %v422
  %v452 = vmul.f32 %v285, %v422
  %v453 = vmul.f32 %v288, %v422
  %v454 = vmul.f32 %v293, %v422
  %v455 = vmul.f32 %v296, %v422
  %v457 = vlaneseq
  %v458 = vshrl.u32 %v457, 7
  %v459 = vsub.s32 0, %v458
  %v460 = vrot.slane %v417, %v459
  %v462 = vadd.f32 %v424, %v460
  %v463 = vadd.f32 %v425, %v460
  %v464 = vadd.f32 %v426, %v460
  %v465 = vadd.f32 %v427, %v460
  %v466 = vadd.f32 %v428, %v460
  %v467 = vadd.f32 %v429, %v460
  %v468 = vadd.f32 %v430, %v460
  %v469 = vadd.f32 %v431, %v460
  %v470 = vadd.f32 %v432, %v460
  %v471 = vadd.f32 %v433, %v460
  %v472 = vadd.f32 %v434, %v460
  %v473 = vadd.f32 %v435, %v460
  %v474 = vadd.f32 %v436, %v460
  %v475 = vadd.f32 %v437, %v460
  %v476 = vadd.f32 %v438, %v460
  %v477 = vadd.f32 %v439, %v460
  %v478 = vadd.f32 %v440, %v460
  %v479 = vadd.f32 %v441, %v460
  %v480 = vadd.f32 %v442, %v460
  %v481 = vadd.f32 %v443, %v460
  %v482 = vadd.f32 %v444, %v460
  %v483 = vadd.f32 %v445, %v460
  %v484 = vadd.f32 %v446, %v460
  %v485 = vadd.f32 %v447, %v460
  %v486 = vadd.f32 %v448, %v460
  %v487 = vadd.f32 %v449, %v460
  %v488 = vadd.f32 %v450, %v460
  %v489 = vadd.f32 %v451, %v460
  %v490 = vadd.f32 %v452, %v460
  %v491 = vadd.f32 %v453, %v460
  %v492 = vadd.f32 %v454, %v460
  %v493 = vadd.f32 %v455, %v460
  %v494 = vmax.f32 %v462, 0.0
  %v495 = vmax.f32 %v463, 0.0
  %v496 = vmax.f32 %v464, 0.0
  %v497 = vmax.f32 %v465, 0.0
  %v498 = vmax.f32 %v466, 0.0
  %v499 = vmax.f32 %v467, 0.0
  %v500 = vmax.f32 %v468, 0.0
  %v501 = vmax.f32 %v469, 0.0
  %v502 = vmax.f32 %v470, 0.0
  %v503 = vmax.f32 %v471, 0.0
  %v504 = vmax.f32 %v472, 0.0
  %v505 = vmax.f32 %v473, 0.0
  %v506 = vmax.f32 %v474, 0.0
  %v507 = vmax.f32 %v475, 0.0
  %v508 = vmax.f32 %v476, 0.0
  %v509 = vmax.f32 %v477, 0.0
  %v510 = vmax.f32 %v478, 0.0
  %v511 = vmax.f32 %v479, 0.0
  %v512 = vmax.f32 %v480, 0.0
  %v513 = vmax.f32 %v481, 0.0
  %v514 = vmax.f32 %v482, 0.0
  %v515 = vmax.f32 %v483, 0.0
  %v516 = vmax.f32 %v484, 0.0
  %v517 = vmax.f32 %v485, 0.0
  %v518 = vmax.f32 %v486, 0.0
  %v519 = vmax.f32 %v487, 0.0
  %v520 = vmax.f32 %v488, 0.0
  %v521 = vmax.f32 %v489, 0.0
  %v522 = vmax.f32 %v490, 0.0
  %v523 = vmax.f32 %v491, 0.0
  %v524 = vmax.f32 %v492, 0.0
  %v525 = vmax.f32 %v493, 0.0
  %v526 = vpack.c.bf16 %v495, %v494
  %v527 = vpack.c.bf16 %v497, %v496
  %v528 = vpack.c.bf16 %v499, %v498
  %v529 = vpack.c.bf16 %v501, %v500
  %v530 = vpack.c.bf16 %v503, %v502
  %v531 = vpack.c.bf16 %v505, %v504
  %v532 = vpack.c.bf16 %v507, %v506
  %v533 = vpack.c.bf16 %v509, %v508
  %v534 = vpack.c.bf16 %v511, %v510
  %v535 = vpack.c.bf16 %v513, %v512
  %v536 = vpack.c.bf16 %v515, %v514
  %v537 = vpack.c.bf16 %v517, %v516
  %v538 = vpack.c.bf16 %v519, %v518
  %v539 = vpack.c.bf16 %v521, %v520
  %v540 = vpack.c.bf16 %v523, %v522
  %v541 = vpack.c.bf16 %v525, %v524
  %v542 = vld [vmem:[%s4] sm:$0xf]
  %v543 = vld [vmem:[%s4 + $0x4] sm:$0xf]
  %v544 = vld [vmem:[%s4 + $0x8] sm:$0xf]
  %v545 = vld [vmem:[%s4 + $0xc] sm:$0xf]
  %v546 = vld [vmem:[%s4 + $0x10] sm:$0xf]
  %v547 = vld [vmem:[%s4 + $0x14] sm:$0xf]
  %v548 = vld [vmem:[%s4 + $0x18] sm:$0xf]
  %v549 = vld [vmem:[%s4 + $0x1c] sm:$0xf]
  %v550 = vld [vmem:[%s4 + $0x20] sm:$0xf]
  %v551 = vld [vmem:[%s4 + $0x24] sm:$0xf]
  %v552 = vld [vmem:[%s4 + $0x28] sm:$0xf]
  %v553 = vld [vmem:[%s4 + $0x2c] sm:$0xf]
  %v554 = vld [vmem:[%s4 + $0x30] sm:$0xf]
  %v555 = vld [vmem:[%s4 + $0x34] sm:$0xf]
  %v556 = vld [vmem:[%s4 + $0x38] sm:$0xf]
  %v557 = vld [vmem:[%s4 + $0x3c] sm:$0xf]
  %v574 = vunpack.c.l.b16 %v542
  %v575 = vunpack.c.l.b16 %v543
  %v576 = vunpack.c.l.b16 %v544
  %v577 = vunpack.c.l.b16 %v545
  %v578 = vunpack.c.l.b16 %v546
  %v579 = vunpack.c.l.b16 %v547
  %v580 = vunpack.c.l.b16 %v548
  %v581 = vunpack.c.l.b16 %v549
  %v582 = vunpack.c.l.b16 %v550
  %v583 = vunpack.c.l.b16 %v551
  %v584 = vunpack.c.l.b16 %v552
  %v585 = vunpack.c.l.b16 %v553
  %v586 = vunpack.c.l.b16 %v554
  %v587 = vunpack.c.l.b16 %v555
  %v588 = vunpack.c.l.b16 %v556
  %v589 = vunpack.c.l.b16 %v557
  %v590 = vpack.c.b16 %v575, %v574
  %v591 = vpack.c.b16 %v577, %v576
  %v592 = vpack.c.b16 %v579, %v578
  %v593 = vpack.c.b16 %v581, %v580
  %v594 = vpack.c.b16 %v583, %v582
  %v595 = vpack.c.b16 %v585, %v584
  %v596 = vpack.c.b16 %v587, %v586
  %v597 = vpack.c.b16 %v589, %v588
  %606 = vmatprep.subr.bf16.mxu0 0
  %607 = vmatpush1.bf16.msra.mxu0 %v590
  %608 = vmatprep.subr.bf16.mxu0 0
  %609 = vmatpush1.bf16.msra.mxu0 %v591
  %610 = vmatprep.subr.bf16.mxu0 0
  %611 = vmatpush1.bf16.msra.mxu0 %v592
  %612 = vmatprep.subr.bf16.mxu0 0
  %613 = vmatpush1.bf16.msra.mxu0 %v593
  %614 = vmatprep.subr.bf16.mxu0 0
  %615 = vmatpush1.bf16.msra.mxu0 %v594
  %616 = vmatprep.subr.bf16.mxu0 0
  %617 = vmatpush1.bf16.msra.mxu0 %v595
  %618 = vmatprep.subr.bf16.mxu0 0
  %619 = vmatpush1.bf16.msra.mxu0 %v596
  %620 = vmatprep.subr.bf16.mxu0 0
  %621 = vmatpush1.bf16.msra.mxu0 %v597
  %622 = vmatprep.subr.bf16.mxu0 0
  %623 = vmatpush1.bf16.msra.mxu0 0
  %624 = vmatprep.subr.bf16.mxu0 0
  %625 = vmatpush1.bf16.msra.mxu0 0
  %626 = vmatprep.subr.bf16.mxu0 0
  %627 = vmatpush1.bf16.msra.mxu0 0
  %628 = vmatprep.subr.bf16.mxu0 0
  %629 = vmatpush1.bf16.msra.mxu0 0
  %630 = vmatprep.subr.bf16.mxu0 0
  %631 = vmatpush1.bf16.msra.mxu0 0
  %632 = vmatprep.subr.bf16.mxu0 0
  %633 = vmatpush1.bf16.msra.mxu0 0
  %634 = vmatprep.subr.bf16.mxu0 0
  %635 = vmatpush1.bf16.msra.mxu0 0
  %636 = vmatprep.subr.bf16.mxu0 0
  %637 = vmatpush1.bf16.msra.mxu0 0
  %638 = vmatprep.mubr.bf16.mxu0 0
  %639 = vmatmul.mubr.bf16.gmra.mrb[0].mxu0 %v526
  %v640 = vpop.f32.mrb[0].mxu0
  %v641 = vadd.f32 0.0, %v640
  %v642 = vpop.f32.mrb[0].mxu0
  %v643 = vpop.f32.mrb[0].mxu0
  %v644 = vadd.f32 0.0, %v643
  %v645 = vpop.f32.mrb[0].mxu0
  %646 = vmatprep.mubr.bf16.mxu0 0
  %647 = vmatmul.mubr.bf16.gmra.mrb[0].mxu0 %v527
  %v648 = vpop.f32.mrb[0].mxu0
  %v649 = vadd.f32 0.0, %v648
  %v650 = vpop.f32.mrb[0].mxu0
  %v651 = vpop.f32.mrb[0].mxu0
  %v652 = vadd.f32 0.0, %v651
  %v653 = vpop.f32.mrb[0].mxu0
  %654 = vmatprep.mubr.bf16.mxu0 0
  %655 = vmatmul.mubr.bf16.gmra.mrb[0].mxu0 %v528
  %v656 = vpop.f32.mrb[0].mxu0
  %v657 = vadd.f32 0.0, %v656
  %v658 = vpop.f32.mrb[0].mxu0
  %v659 = vpop.f32.mrb[0].mxu0
  %v660 = vadd.f32 0.0, %v659
  %v661 = vpop.f32.mrb[0].mxu0
  %662 = vmatprep.mubr.bf16.mxu0 0
  %663 = vmatmul.mubr.bf16.gmra.mrb[0].mxu0 %v529
  %v664 = vpop.f32.mrb[0].mxu0
  %v665 = vadd.f32 0.0, %v664
  %v666 = vpop.f32.mrb[0].mxu0
  %v667 = vpop.f32.mrb[0].mxu0
  %v668 = vadd.f32 0.0, %v667
  %v669 = vpop.f32.mrb[0].mxu0
  %670 = vmatprep.mubr.bf16.mxu0 0
  %671 = vmatmul.mubr.bf16.gmra.mrb[0].mxu0 %v530
  %v672 = vpop.f32.mrb[0].mxu0
  %v673 = vadd.f32 0.0, %v672
  %v674 = vpop.f32.mrb[0].mxu0
  %v675 = vpop.f32.mrb[0].mxu0
  %v676 = vadd.f32 0.0, %v675
  %v677 = vpop.f32.mrb[0].mxu0
  %678 = vmatprep.mubr.bf16.mxu0 0
  %679 = vmatmul.mubr.bf16.gmra.mrb[0].mxu0 %v531
  %v680 = vpop.f32.mrb[0].mxu0
  %v681 = vadd.f32 0.0, %v680
  %v682 = vpop.f32.mrb[0].mxu0
  %v683 = vpop.f32.mrb[0].mxu0
  %v684 = vadd.f32 0.0, %v683
  %v685 = vpop.f32.mrb[0].mxu0
  %686 = vmatprep.mubr.bf16.mxu0 0
  %687 = vmatmul.mubr.bf16.gmra.mrb[0].mxu0 %v532
  %v688 = vpop.f32.mrb[0].mxu0
  %v689 = vadd.f32 0.0, %v688
  %v690 = vpop.f32.mrb[0].mxu0
  %v691 = vpop.f32.mrb[0].mxu0
  %v692 = vadd.f32 0.0, %v691
  %v693 = vpop.f32.mrb[0].mxu0
  %694 = vmatprep.mubr.bf16.mxu0 0
  %695 = vmatmul.mubr.bf16.gmra.mrb[0].mxu0 %v533
  %v696 = vpop.f32.mrb[0].mxu0
  %v697 = vadd.f32 0.0, %v696
  %v698 = vpop.f32.mrb[0].mxu0
  %v699 = vpop.f32.mrb[0].mxu0
  %v700 = vadd.f32 0.0, %v699
  %v701 = vpop.f32.mrb[0].mxu0
  %702 = vmatprep.mubr.bf16.mxu0 0
  %703 = vmatmul.mubr.bf16.gmra.mrb[0].mxu0 %v534
  %v704 = vpop.f32.mrb[0].mxu0
  %v705 = vadd.f32 0.0, %v704
  %v706 = vpop.f32.mrb[0].mxu0
  %v707 = vpop.f32.mrb[0].mxu0
  %v708 = vadd.f32 0.0, %v707
  %v709 = vpop.f32.mrb[0].mxu0
  %710 = vmatprep.mubr.bf16.mxu0 0
  %711 = vmatmul.mubr.bf16.gmra.mrb[0].mxu0 %v535
  %v712 = vpop.f32.mrb[0].mxu0
  %v713 = vadd.f32 0.0, %v712
  %v714 = vpop.f32.mrb[0].mxu0
  %v715 = vpop.f32.mrb[0].mxu0
  %v716 = vadd.f32 0.0, %v715
  %v717 = vpop.f32.mrb[0].mxu0
  %718 = vmatprep.mubr.bf16.mxu0 0
  %719 = vmatmul.mubr.bf16.gmra.mrb[0].mxu0 %v536
  %v720 = vpop.f32.mrb[0].mxu0
  %v721 = vadd.f32 0.0, %v720
  %v722 = vpop.f32.mrb[0].mxu0
  %v723 = vpop.f32.mrb[0].mxu0
  %v724 = vadd.f32 0.0, %v723
  %v725 = vpop.f32.mrb[0].mxu0
  %726 = vmatprep.mubr.bf16.mxu0 0
  %727 = vmatmul.mubr.bf16.gmra.mrb[0].mxu0 %v537
  %v728 = vpop.f32.mrb[0].mxu0
  %v729 = vadd.f32 0.0, %v728
  %v730 = vpop.f32.mrb[0].mxu0
  %v731 = vpop.f32.mrb[0].mxu0
  %v732 = vadd.f32 0.0, %v731
  %v733 = vpop.f32.mrb[0].mxu0
  %734 = vmatprep.mubr.bf16.mxu0 0
  %735 = vmatmul.mubr.bf16.gmra.mrb[0].mxu0 %v538
  %v736 = vpop.f32.mrb[0].mxu0
  %v737 = vadd.f32 0.0, %v736
  %v738 = vpop.f32.mrb[0].mxu0
  %v739 = vpop.f32.mrb[0].mxu0
  %v740 = vadd.f32 0.0, %v739
  %v741 = vpop.f32.mrb[0].mxu0
  %742 = vmatprep.mubr.bf16.mxu0 0
  %743 = vmatmul.mubr.bf16.gmra.mrb[0].mxu0 %v539
  %v744 = vpop.f32.mrb[0].mxu0
  %v745 = vadd.f32 0.0, %v744
  %v746 = vpop.f32.mrb[0].mxu0
  %v747 = vpop.f32.mrb[0].mxu0
  %v748 = vadd.f32 0.0, %v747
  %v749 = vpop.f32.mrb[0].mxu0
  %750 = vmatprep.mubr.bf16.mxu0 0
  %751 = vmatmul.mubr.bf16.gmra.mrb[0].mxu0 %v540
  %v752 = vpop.f32.mrb[0].mxu0
  %v753 = vadd.f32 0.0, %v752
  %v754 = vpop.f32.mrb[0].mxu0
  %v755 = vpop.f32.mrb[0].mxu0
  %v756 = vadd.f32 0.0, %v755
  %v757 = vpop.f32.mrb[0].mxu0
  %758 = vmatprep.mubr.bf16.mxu0 0
  %759 = vmatmul.mubr.bf16.gmra.mrb[0].mxu0 %v541
  %v760 = vpop.f32.mrb[0].mxu0
  %v761 = vadd.f32 0.0, %v760
  %v762 = vpop.f32.mrb[0].mxu0
  %v763 = vpop.f32.mrb[0].mxu0
  %v764 = vadd.f32 0.0, %v763
  %v765 = vpop.f32.mrb[0].mxu0
  %766 = vdwg.mxu0
  %v767 = vadd.f32 %v641, %v644
  %v768 = vadd.f32 %v767, %v649
  %v769 = vadd.f32 %v768, %v652
  %v770 = vadd.f32 %v769, %v657
  %v771 = vadd.f32 %v770, %v660
  %v772 = vadd.f32 %v771, %v665
  %v773 = vadd.f32 %v772, %v668
  %v774 = vadd.f32 %v773, %v673
  %v775 = vadd.f32 %v774, %v676
  %v776 = vadd.f32 %v775, %v681
  %v777 = vadd.f32 %v776, %v684
  %v778 = vadd.f32 %v777, %v689
  %v779 = vadd.f32 %v778, %v692
  %v780 = vadd.f32 %v779, %v697
  %v781 = vadd.f32 %v780, %v700
  %v782 = vadd.f32 %v781, %v705
  %v783 = vadd.f32 %v782, %v708
  %v784 = vadd.f32 %v783, %v713
  %v785 = vadd.f32 %v784, %v716
  %v786 = vadd.f32 %v785, %v721
  %v787 = vadd.f32 %v786, %v724
  %v788 = vadd.f32 %v787, %v729
  %v789 = vadd.f32 %v788, %v732
  %v790 = vadd.f32 %v789, %v737
  %v791 = vadd.f32 %v790, %v740
  %v792 = vadd.f32 %v791, %v745
  %v793 = vadd.f32 %v792, %v748
  %v794 = vadd.f32 %v793, %v753
  %v795 = vadd.f32 %v794, %v756
  %v796 = vadd.f32 %v795, %v761
  %v797 = vadd.f32 %v796, %v764
  %v798 = vrot.slane %v797, 4
  %v799 = vadd.f32 %v797, %v798
  %v800 = vrot.slane %v799, 2
  %v801 = vadd.f32 %v799, %v800
  %v802 = vrot.slane %v801, 1
  %v803 = vadd.f32 %v801, %v802
  %v804 = vmul.f32 %v803, %v336
  %v805 = vmul.f32 %v641, %v641
  %v806 = vmul.f32 %v644, %v644
  %v807 = vmul.f32 %v649, %v649
  %v808 = vmul.f32 %v652, %v652
  %v809 = vmul.f32 %v657, %v657
  %v810 = vmul.f32 %v660, %v660
  %v811 = vmul.f32 %v665, %v665
  %v812 = vmul.f32 %v668, %v668
  %v813 = vmul.f32 %v673, %v673
  %v814 = vmul.f32 %v676, %v676
  %v815 = vmul.f32 %v681, %v681
  %v816 = vmul.f32 %v684, %v684
  %v817 = vmul.f32 %v689, %v689
  %v818 = vmul.f32 %v692, %v692
  %v819 = vmul.f32 %v697, %v697
  %v820 = vmul.f32 %v700, %v700
  %v821 = vmul.f32 %v705, %v705
  %v822 = vmul.f32 %v708, %v708
  %v823 = vmul.f32 %v713, %v713
  %v824 = vmul.f32 %v716, %v716
  %v825 = vmul.f32 %v721, %v721
  %v826 = vmul.f32 %v724, %v724
  %v827 = vmul.f32 %v729, %v729
  %v828 = vmul.f32 %v732, %v732
  %v829 = vmul.f32 %v737, %v737
  %v830 = vmul.f32 %v740, %v740
  %v831 = vmul.f32 %v745, %v745
  %v832 = vmul.f32 %v748, %v748
  %v833 = vmul.f32 %v753, %v753
  %v834 = vmul.f32 %v756, %v756
  %v835 = vmul.f32 %v761, %v761
  %v836 = vmul.f32 %v764, %v764
  %v837 = vadd.f32 %v805, %v806
  %v838 = vadd.f32 %v837, %v807
  %v839 = vadd.f32 %v838, %v808
  %v840 = vadd.f32 %v839, %v809
  %v841 = vadd.f32 %v840, %v810
  %v842 = vadd.f32 %v841, %v811
  %v843 = vadd.f32 %v842, %v812
  %v844 = vadd.f32 %v843, %v813
  %v845 = vadd.f32 %v844, %v814
  %v846 = vadd.f32 %v845, %v815
  %v847 = vadd.f32 %v846, %v816
  %v848 = vadd.f32 %v847, %v817
  %v849 = vadd.f32 %v848, %v818
  %v850 = vadd.f32 %v849, %v819
  %v851 = vadd.f32 %v850, %v820
  %v852 = vadd.f32 %v851, %v821
  %v853 = vadd.f32 %v852, %v822
  %v854 = vadd.f32 %v853, %v823
  %v855 = vadd.f32 %v854, %v824
  %v856 = vadd.f32 %v855, %v825
  %v857 = vadd.f32 %v856, %v826
  %v858 = vadd.f32 %v857, %v827
  %v859 = vadd.f32 %v858, %v828
  %v860 = vadd.f32 %v859, %v829
  %v861 = vadd.f32 %v860, %v830
  %v862 = vadd.f32 %v861, %v831
  %v863 = vadd.f32 %v862, %v832
  %v864 = vadd.f32 %v863, %v833
  %v865 = vadd.f32 %v864, %v834
  %v866 = vadd.f32 %v865, %v835
  %v867 = vadd.f32 %v866, %v836
  %v868 = vrot.slane %v867, 4
  %v869 = vadd.f32 %v867, %v868
  %v870 = vrot.slane %v869, 2
  %v871 = vadd.f32 %v869, %v870
  %v872 = vrot.slane %v871, 1
  %v873 = vadd.f32 %v871, %v872
  %v874 = vmul.f32 %v873, %v336
  %v875 = vld [vmem:[%s5] sm:$0x1]
  %v876 = vld [vmem:[%s6] sm:$0x1]
  %v877 = vmul.f32 %v804, %v804
  %v878 = vsub.f32 %v874, %v877
  %v879 = vmax.f32 %v878, 0.0
  %v880 = vadd.f32 %v879, 1e-05
  %v881 = vrsqrt.pop %v880
  %v882 = vmul.f32 %v875, %v881
  %v883 = vmul.f32 %v804, %v882
  %v884 = vsub.f32 %v876, %v883
  %v886 = vlaneseq
  %v887 = vshrl.u32 %v886, 7
  %v888 = vsub.s32 0, %v887
  %v889 = vrot.slane %v882, %v888
  %v891 = vmul.f32 %v641, %v889
  %v892 = vmul.f32 %v644, %v889
  %v893 = vmul.f32 %v649, %v889
  %v894 = vmul.f32 %v652, %v889
  %v895 = vmul.f32 %v657, %v889
  %v896 = vmul.f32 %v660, %v889
  %v897 = vmul.f32 %v665, %v889
  %v898 = vmul.f32 %v668, %v889
  %v899 = vmul.f32 %v673, %v889
  %v900 = vmul.f32 %v676, %v889
  %v901 = vmul.f32 %v681, %v889
  %v902 = vmul.f32 %v684, %v889
  %v903 = vmul.f32 %v689, %v889
  %v904 = vmul.f32 %v692, %v889
  %v905 = vmul.f32 %v697, %v889
  %v906 = vmul.f32 %v700, %v889
  %v907 = vmul.f32 %v705, %v889
  %v908 = vmul.f32 %v708, %v889
  %v909 = vmul.f32 %v713, %v889
  %v910 = vmul.f32 %v716, %v889
  %v911 = vmul.f32 %v721, %v889
  %v912 = vmul.f32 %v724, %v889
  %v913 = vmul.f32 %v729, %v889
  %v914 = vmul.f32 %v732, %v889
  %v915 = vmul.f32 %v737, %v889
  %v916 = vmul.f32 %v740, %v889
  %v917 = vmul.f32 %v745, %v889
  %v918 = vmul.f32 %v748, %v889
  %v919 = vmul.f32 %v753, %v889
  %v920 = vmul.f32 %v756, %v889
  %v921 = vmul.f32 %v761, %v889
  %v922 = vmul.f32 %v764, %v889
  %v924 = vlaneseq
  %v925 = vshrl.u32 %v924, 7
  %v926 = vsub.s32 0, %v925
  %v927 = vrot.slane %v884, %v926
  %v929 = vadd.f32 %v891, %v927
  %v930 = vadd.f32 %v892, %v927
  %v931 = vadd.f32 %v893, %v927
  %v932 = vadd.f32 %v894, %v927
  %v933 = vadd.f32 %v895, %v927
  %v934 = vadd.f32 %v896, %v927
  %v935 = vadd.f32 %v897, %v927
  %v936 = vadd.f32 %v898, %v927
  %v937 = vadd.f32 %v899, %v927
  %v938 = vadd.f32 %v900, %v927
  %v939 = vadd.f32 %v901, %v927
  %v940 = vadd.f32 %v902, %v927
  %v941 = vadd.f32 %v903, %v927
  %v942 = vadd.f32 %v904, %v927
  %v943 = vadd.f32 %v905, %v927
  %v944 = vadd.f32 %v906, %v927
  %v945 = vadd.f32 %v907, %v927
  %v946 = vadd.f32 %v908, %v927
  %v947 = vadd.f32 %v909, %v927
  %v948 = vadd.f32 %v910, %v927
  %v949 = vadd.f32 %v911, %v927
  %v950 = vadd.f32 %v912, %v927
  %v951 = vadd.f32 %v913, %v927
  %v952 = vadd.f32 %v914, %v927
  %v953 = vadd.f32 %v915, %v927
  %v954 = vadd.f32 %v916, %v927
  %v955 = vadd.f32 %v917, %v927
  %v956 = vadd.f32 %v918, %v927
  %v957 = vadd.f32 %v919, %v927
  %v958 = vadd.f32 %v920, %v927
  %v959 = vadd.f32 %v921, %v927
  %v960 = vadd.f32 %v922, %v927
  %v961 = vmax.f32 %v929, 0.0
  %v962 = vmax.f32 %v930, 0.0
  %v963 = vmax.f32 %v931, 0.0
  %v964 = vmax.f32 %v932, 0.0
  %v965 = vmax.f32 %v933, 0.0
  %v966 = vmax.f32 %v934, 0.0
  %v967 = vmax.f32 %v935, 0.0
  %v968 = vmax.f32 %v936, 0.0
  %v969 = vmax.f32 %v937, 0.0
  %v970 = vmax.f32 %v938, 0.0
  %v971 = vmax.f32 %v939, 0.0
  %v972 = vmax.f32 %v940, 0.0
  %v973 = vmax.f32 %v941, 0.0
  %v974 = vmax.f32 %v942, 0.0
  %v975 = vmax.f32 %v943, 0.0
  %v976 = vmax.f32 %v944, 0.0
  %v977 = vmax.f32 %v945, 0.0
  %v978 = vmax.f32 %v946, 0.0
  %v979 = vmax.f32 %v947, 0.0
  %v980 = vmax.f32 %v948, 0.0
  %v981 = vmax.f32 %v949, 0.0
  %v982 = vmax.f32 %v950, 0.0
  %v983 = vmax.f32 %v951, 0.0
  %v984 = vmax.f32 %v952, 0.0
  %v985 = vmax.f32 %v953, 0.0
  %v986 = vmax.f32 %v954, 0.0
  %v987 = vmax.f32 %v955, 0.0
  %v988 = vmax.f32 %v956, 0.0
  %v989 = vmax.f32 %v957, 0.0
  %v990 = vmax.f32 %v958, 0.0
  %v991 = vmax.f32 %v959, 0.0
  %v992 = vmax.f32 %v960, 0.0
  %v993 = vpack.c.bf16 %v962, %v961
  %v994 = vpack.c.bf16 %v964, %v963
  %v995 = vpack.c.bf16 %v966, %v965
  %v996 = vpack.c.bf16 %v968, %v967
  %v997 = vpack.c.bf16 %v970, %v969
  %v998 = vpack.c.bf16 %v972, %v971
  %v999 = vpack.c.bf16 %v974, %v973
  %v1000 = vpack.c.bf16 %v976, %v975
  %v1001 = vpack.c.bf16 %v978, %v977
  %v1002 = vpack.c.bf16 %v980, %v979
  %v1003 = vpack.c.bf16 %v982, %v981
  %v1004 = vpack.c.bf16 %v984, %v983
  %v1005 = vpack.c.bf16 %v986, %v985
  %v1006 = vpack.c.bf16 %v988, %v987
  %v1007 = vpack.c.bf16 %v990, %v989
  %v1008 = vpack.c.bf16 %v992, %v991
  %v1009 = vld [vmem:[%s7] sm:$0xf]
  %v1010 = vld [vmem:[%s7 + $0x4] sm:$0xf]
  %v1011 = vld [vmem:[%s7 + $0x8] sm:$0xf]
  %v1012 = vld [vmem:[%s7 + $0xc] sm:$0xf]
  %v1013 = vld [vmem:[%s7 + $0x10] sm:$0xf]
  %v1014 = vld [vmem:[%s7 + $0x14] sm:$0xf]
  %v1015 = vld [vmem:[%s7 + $0x18] sm:$0xf]
  %v1016 = vld [vmem:[%s7 + $0x1c] sm:$0xf]
  %v1017 = vld [vmem:[%s7 + $0x20] sm:$0xf]
  %v1018 = vld [vmem:[%s7 + $0x24] sm:$0xf]
  %v1019 = vld [vmem:[%s7 + $0x28] sm:$0xf]
  %v1020 = vld [vmem:[%s7 + $0x2c] sm:$0xf]
  %v1021 = vld [vmem:[%s7 + $0x30] sm:$0xf]
  %v1022 = vld [vmem:[%s7 + $0x34] sm:$0xf]
  %v1023 = vld [vmem:[%s7 + $0x38] sm:$0xf]
  %v1024 = vld [vmem:[%s7 + $0x3c] sm:$0xf]
  %v1025 = vld [vmem:[%s8] sm:$0x1]
  %v1027 = vlaneseq
  %v1028 = vshrl.u32 %v1027, 7
  %v1029 = vsub.s32 0, %v1028
  %v1030 = vrot.slane %v1025, %v1029
  %v1048 = vunpack.c.l.b16 %v1009
  %v1049 = vunpack.c.l.b16 %v1010
  %v1050 = vunpack.c.l.b16 %v1011
  %v1051 = vunpack.c.l.b16 %v1012
  %v1052 = vunpack.c.l.b16 %v1013
  %v1053 = vunpack.c.l.b16 %v1014
  %v1054 = vunpack.c.l.b16 %v1015
  %v1055 = vunpack.c.l.b16 %v1016
  %v1056 = vunpack.c.l.b16 %v1017
  %v1057 = vunpack.c.l.b16 %v1018
  %v1058 = vunpack.c.l.b16 %v1019
  %v1059 = vunpack.c.l.b16 %v1020
  %v1060 = vunpack.c.l.b16 %v1021
  %v1061 = vunpack.c.l.b16 %v1022
  %v1062 = vunpack.c.l.b16 %v1023
  %v1063 = vunpack.c.l.b16 %v1024
  %v1064 = vpack.c.b16 %v1049, %v1048
  %v1065 = vpack.c.b16 %v1051, %v1050
  %v1066 = vpack.c.b16 %v1053, %v1052
  %v1067 = vpack.c.b16 %v1055, %v1054
  %v1068 = vpack.c.b16 %v1057, %v1056
  %v1069 = vpack.c.b16 %v1059, %v1058
  %v1070 = vpack.c.b16 %v1061, %v1060
  %v1071 = vpack.c.b16 %v1063, %v1062
  %1080 = vmatprep.subr.bf16.mxu0 0
  %1081 = vmatpush1.bf16.msra.mxu0 %v1064
  %1082 = vmatprep.subr.bf16.mxu0 0
  %1083 = vmatpush1.bf16.msra.mxu0 %v1065
  %1084 = vmatprep.subr.bf16.mxu0 0
  %1085 = vmatpush1.bf16.msra.mxu0 %v1066
  %1086 = vmatprep.subr.bf16.mxu0 0
  %1087 = vmatpush1.bf16.msra.mxu0 %v1067
  %1088 = vmatprep.subr.bf16.mxu0 0
  %1089 = vmatpush1.bf16.msra.mxu0 %v1068
  %1090 = vmatprep.subr.bf16.mxu0 0
  %1091 = vmatpush1.bf16.msra.mxu0 %v1069
  %1092 = vmatprep.subr.bf16.mxu0 0
  %1093 = vmatpush1.bf16.msra.mxu0 %v1070
  %1094 = vmatprep.subr.bf16.mxu0 0
  %1095 = vmatpush1.bf16.msra.mxu0 %v1071
  %1096 = vmatprep.subr.bf16.mxu0 0
  %1097 = vmatpush1.bf16.msra.mxu0 0
  %1098 = vmatprep.subr.bf16.mxu0 0
  %1099 = vmatpush1.bf16.msra.mxu0 0
  %1100 = vmatprep.subr.bf16.mxu0 0
  %1101 = vmatpush1.bf16.msra.mxu0 0
  %1102 = vmatprep.subr.bf16.mxu0 0
  %1103 = vmatpush1.bf16.msra.mxu0 0
  %1104 = vmatprep.subr.bf16.mxu0 0
  %1105 = vmatpush1.bf16.msra.mxu0 0
  %1106 = vmatprep.subr.bf16.mxu0 0
  %1107 = vmatpush1.bf16.msra.mxu0 0
  %1108 = vmatprep.subr.bf16.mxu0 0
  %1109 = vmatpush1.bf16.msra.mxu0 0
  %1110 = vmatprep.subr.bf16.mxu0 0
  %1111 = vmatpush1.bf16.msra.mxu0 0
  %1112 = vmatprep.mubr.bf16.mxu0 0
  %1113 = vmatmul.mubr.bf16.gmra.mrb[0].mxu0 %v993
  %v1114 = vpop.f32.mrb[0].mxu0
  %v1115 = vadd.f32 %v1030, %v1114
  %v1116 = vpop.f32.mrb[0].mxu0
  %v1117 = vpop.f32.mrb[0].mxu0
  %v1118 = vadd.f32 %v1030, %v1117
  %v1119 = vpop.f32.mrb[0].mxu0
  %1120 = vmatprep.mubr.bf16.mxu0 0
  %1121 = vmatmul.mubr.bf16.gmra.mrb[0].mxu0 %v994
  %v1122 = vpop.f32.mrb[0].mxu0
  %v1123 = vadd.f32 %v1030, %v1122
  %v1124 = vpop.f32.mrb[0].mxu0
  %v1125 = vpop.f32.mrb[0].mxu0
  %v1126 = vadd.f32 %v1030, %v1125
  %v1127 = vpop.f32.mrb[0].mxu0
  %1128 = vmatprep.mubr.bf16.mxu0 0
  %1129 = vmatmul.mubr.bf16.gmra.mrb[0].mxu0 %v995
  %v1130 = vpop.f32.mrb[0].mxu0
  %v1131 = vadd.f32 %v1030, %v1130
  %v1132 = vpop.f32.mrb[0].mxu0
  %v1133 = vpop.f32.mrb[0].mxu0
  %v1134 = vadd.f32 %v1030, %v1133
  %v1135 = vpop.f32.mrb[0].mxu0
  %1136 = vmatprep.mubr.bf16.mxu0 0
  %1137 = vmatmul.mubr.bf16.gmra.mrb[0].mxu0 %v996
  %v1138 = vpop.f32.mrb[0].mxu0
  %v1139 = vadd.f32 %v1030, %v1138
  %v1140 = vpop.f32.mrb[0].mxu0
  %v1141 = vpop.f32.mrb[0].mxu0
  %v1142 = vadd.f32 %v1030, %v1141
  %v1143 = vpop.f32.mrb[0].mxu0
  %1144 = vmatprep.mubr.bf16.mxu0 0
  %1145 = vmatmul.mubr.bf16.gmra.mrb[0].mxu0 %v997
  %v1146 = vpop.f32.mrb[0].mxu0
  %v1147 = vadd.f32 %v1030, %v1146
  %v1148 = vpop.f32.mrb[0].mxu0
  %v1149 = vpop.f32.mrb[0].mxu0
  %v1150 = vadd.f32 %v1030, %v1149
  %v1151 = vpop.f32.mrb[0].mxu0
  %1152 = vmatprep.mubr.bf16.mxu0 0
  %1153 = vmatmul.mubr.bf16.gmra.mrb[0].mxu0 %v998
  %v1154 = vpop.f32.mrb[0].mxu0
  %v1155 = vadd.f32 %v1030, %v1154
  %v1156 = vpop.f32.mrb[0].mxu0
  %v1157 = vpop.f32.mrb[0].mxu0
  %v1158 = vadd.f32 %v1030, %v1157
  %v1159 = vpop.f32.mrb[0].mxu0
  %1160 = vmatprep.mubr.bf16.mxu0 0
  %1161 = vmatmul.mubr.bf16.gmra.mrb[0].mxu0 %v999
  %v1162 = vpop.f32.mrb[0].mxu0
  %v1163 = vadd.f32 %v1030, %v1162
  %v1164 = vpop.f32.mrb[0].mxu0
  %v1165 = vpop.f32.mrb[0].mxu0
  %v1166 = vadd.f32 %v1030, %v1165
  %v1167 = vpop.f32.mrb[0].mxu0
  %1168 = vmatprep.mubr.bf16.mxu0 0
  %1169 = vmatmul.mubr.bf16.gmra.mrb[0].mxu0 %v1000
  %v1170 = vpop.f32.mrb[0].mxu0
  %v1171 = vadd.f32 %v1030, %v1170
  %v1172 = vpop.f32.mrb[0].mxu0
  %v1173 = vpop.f32.mrb[0].mxu0
  %v1174 = vadd.f32 %v1030, %v1173
  %v1175 = vpop.f32.mrb[0].mxu0
  %1176 = vmatprep.mubr.bf16.mxu0 0
  %1177 = vmatmul.mubr.bf16.gmra.mrb[0].mxu0 %v1001
  %v1178 = vpop.f32.mrb[0].mxu0
  %v1179 = vadd.f32 %v1030, %v1178
  %v1180 = vpop.f32.mrb[0].mxu0
  %v1181 = vpop.f32.mrb[0].mxu0
  %v1182 = vadd.f32 %v1030, %v1181
  %v1183 = vpop.f32.mrb[0].mxu0
  %1184 = vmatprep.mubr.bf16.mxu0 0
  %1185 = vmatmul.mubr.bf16.gmra.mrb[0].mxu0 %v1002
  %v1186 = vpop.f32.mrb[0].mxu0
  %v1187 = vadd.f32 %v1030, %v1186
  %v1188 = vpop.f32.mrb[0].mxu0
  %v1189 = vpop.f32.mrb[0].mxu0
  %v1190 = vadd.f32 %v1030, %v1189
  %v1191 = vpop.f32.mrb[0].mxu0
  %1192 = vmatprep.mubr.bf16.mxu0 0
  %1193 = vmatmul.mubr.bf16.gmra.mrb[0].mxu0 %v1003
  %v1194 = vpop.f32.mrb[0].mxu0
  %v1195 = vadd.f32 %v1030, %v1194
  %v1196 = vpop.f32.mrb[0].mxu0
  %v1197 = vpop.f32.mrb[0].mxu0
  %v1198 = vadd.f32 %v1030, %v1197
  %v1199 = vpop.f32.mrb[0].mxu0
  %1200 = vmatprep.mubr.bf16.mxu0 0
  %1201 = vmatmul.mubr.bf16.gmra.mrb[0].mxu0 %v1004
  %v1202 = vpop.f32.mrb[0].mxu0
  %v1203 = vadd.f32 %v1030, %v1202
  %v1204 = vpop.f32.mrb[0].mxu0
  %v1205 = vpop.f32.mrb[0].mxu0
  %v1206 = vadd.f32 %v1030, %v1205
  %v1207 = vpop.f32.mrb[0].mxu0
  %1208 = vmatprep.mubr.bf16.mxu0 0
  %1209 = vmatmul.mubr.bf16.gmra.mrb[0].mxu0 %v1005
  %v1210 = vpop.f32.mrb[0].mxu0
  %v1211 = vadd.f32 %v1030, %v1210
  %v1212 = vpop.f32.mrb[0].mxu0
  %v1213 = vpop.f32.mrb[0].mxu0
  %v1214 = vadd.f32 %v1030, %v1213
  %v1215 = vpop.f32.mrb[0].mxu0
  %1216 = vmatprep.mubr.bf16.mxu0 0
  %1217 = vmatmul.mubr.bf16.gmra.mrb[0].mxu0 %v1006
  %v1218 = vpop.f32.mrb[0].mxu0
  %v1219 = vadd.f32 %v1030, %v1218
  %v1220 = vpop.f32.mrb[0].mxu0
  %v1221 = vpop.f32.mrb[0].mxu0
  %v1222 = vadd.f32 %v1030, %v1221
  %v1223 = vpop.f32.mrb[0].mxu0
  %1224 = vmatprep.mubr.bf16.mxu0 0
  %1225 = vmatmul.mubr.bf16.gmra.mrb[0].mxu0 %v1007
  %v1226 = vpop.f32.mrb[0].mxu0
  %v1227 = vadd.f32 %v1030, %v1226
  %v1228 = vpop.f32.mrb[0].mxu0
  %v1229 = vpop.f32.mrb[0].mxu0
  %v1230 = vadd.f32 %v1030, %v1229
  %v1231 = vpop.f32.mrb[0].mxu0
  %1232 = vmatprep.mubr.bf16.mxu0 0
  %1233 = vmatmul.mubr.bf16.gmra.mrb[0].mxu0 %v1008
  %v1234 = vpop.f32.mrb[0].mxu0
  %v1235 = vadd.f32 %v1030, %v1234
  %v1236 = vpop.f32.mrb[0].mxu0
  %v1237 = vpop.f32.mrb[0].mxu0
  %v1238 = vadd.f32 %v1030, %v1237
  %v1239 = vpop.f32.mrb[0].mxu0
  %1240 = vdwg.mxu0
  %1241 = vst [vmem:[%s9] sm:$0xff] %v1115
  %1242 = vst [vmem:[%s9 + $0x8] sm:$0xff] %v1118
  %1243 = vst [vmem:[%s9 + $0x10] sm:$0xff] %v1123
  %1244 = vst [vmem:[%s9 + $0x18] sm:$0xff] %v1126
  %1245 = vst [vmem:[%s9 + $0x20] sm:$0xff] %v1131
  %1246 = vst [vmem:[%s9 + $0x28] sm:$0xff] %v1134
  %1247 = vst [vmem:[%s9 + $0x30] sm:$0xff] %v1139
  %1248 = vst [vmem:[%s9 + $0x38] sm:$0xff] %v1142
  %1249 = vst [vmem:[%s9 + $0x40] sm:$0xff] %v1147
  %1250 = vst [vmem:[%s9 + $0x48] sm:$0xff] %v1150
  %1251 = vst [vmem:[%s9 + $0x50] sm:$0xff] %v1155
  %1252 = vst [vmem:[%s9 + $0x58] sm:$0xff] %v1158
  %1253 = vst [vmem:[%s9 + $0x60] sm:$0xff] %v1163
  %1254 = vst [vmem:[%s9 + $0x68] sm:$0xff] %v1166
  %1255 = vst [vmem:[%s9 + $0x70] sm:$0xff] %v1171
  %1256 = vst [vmem:[%s9 + $0x78] sm:$0xff] %v1174
  %1257 = vst [vmem:[%s9 + $0x80] sm:$0xff] %v1179
  %1258 = vst [vmem:[%s9 + $0x88] sm:$0xff] %v1182
  %1259 = vst [vmem:[%s9 + $0x90] sm:$0xff] %v1187
  %1260 = vst [vmem:[%s9 + $0x98] sm:$0xff] %v1190
  %1261 = vst [vmem:[%s9 + $0xa0] sm:$0xff] %v1195
  %1262 = vst [vmem:[%s9 + $0xa8] sm:$0xff] %v1198
  %1263 = vst [vmem:[%s9 + $0xb0] sm:$0xff] %v1203
  %1264 = vst [vmem:[%s9 + $0xb8] sm:$0xff] %v1206
  %1265 = vst [vmem:[%s9 + $0xc0] sm:$0xff] %v1211
  %1266 = vst [vmem:[%s9 + $0xc8] sm:$0xff] %v1214
  %1267 = vst [vmem:[%s9 + $0xd0] sm:$0xff] %v1219
  %1268 = vst [vmem:[%s9 + $0xd8] sm:$0xff] %v1222
  %1269 = vst [vmem:[%s9 + $0xe0] sm:$0xff] %v1227
  %1270 = vst [vmem:[%s9 + $0xe8] sm:$0xff] %v1230
  %1271 = vst [vmem:[%s9 + $0xf0] sm:$0xff] %v1235
  %1272 = vst [vmem:[%s9 + $0xf8] sm:$0xff] %v1238
  // Predicated region
  $region38: #{neuron_network_forward.1} parent=0 // pred_check
    _
  $region39: #{neuron_network_forward.1} parent=0 // pred_check_branch
    %1274 = sbr.rel (0) target = $region41
  $region40: #{neuron_network_forward.1} parent=0 // pred_region
    _
  $region41: #{neuron_network_forward.1} parent=0 // pred_fallthru
    _
  // Predicated region
  $region42: #{neuron_network_forward.1} parent=0 // pred_check
    _
  $region43: #{neuron_network_forward.1} parent=0 // pred_check_branch
    %1276 = sbr.rel (0) target = $region45
  $region44: #{neuron_network_forward.1} parent=0 // pred_region
    _
  $region45: #{neuron_network_forward.1} parent=0 // pred_fallthru
    _

</llo_original>
